<compile_context>
chip_gen: v5e
topology: v5e:2x2
jax: 0.10.0
libtpu: 0.0.40
codegen_flags: <defaults>
</compile_context>

<pallas_src>
import jax
import jax.numpy as jnp
from jax import lax
from jax.experimental import pallas as pl
from jax.experimental.pallas import tpu as pltpu


# ----------------------------------------------------------------------------
# Fused kernel: (folded encoder) distances -> argmin -> (folded decoder)
# reconstruction, plus per-parallel-slice usage-histogram / MSE accumulators.
# Layout: channels / codebook entries on sublanes, pixels on lanes (lane-dense).
# ----------------------------------------------------------------------------
def fused_vqae_kernel(x_ref, sw_ref, sb_ref, dcb_ref, bd_ref,
                      xr_ref, idx_ref, hist_ref, mse_ref):
    i = pl.program_id(1)          # inner ("arbitrary") axis carries accumulators

    @pl.when(i == 0)
    def _init():
        hist_ref[...] = jnp.zeros_like(hist_ref)
        mse_ref[...] = jnp.zeros_like(mse_ref)

    x = x_ref[...]                                  # (C, tn)
    sw = sw_ref[...]                                # (K, C)   = -2 * cb @ w_enc^T
    C = x.shape[0]
    K = sw.shape[0]
    tn = x.shape[1]

    # Distance surrogate  d[k, n] = ||cb_k||^2 - 2 cb_k . z_n  (||z_n||^2 is
    # constant in k and dropped), with the encoder folded in.  C = 4 ->
    # 4 VPU broadcast-FMAs onto (K, tn) instead of any MXU pass.
    d = sb_ref[...] + sw[:, 0:1] * x[0:1, :]        # (K, tn)
    for c in range(1, C):
        d = d + sw[:, c:c + 1] * x[c:c + 1, :]

    # argmin over K (first occurrence on ties), via f32 index arithmetic.
    dmin = jnp.min(d, axis=0, keepdims=True)                              # (1, tn)
    rows_f = lax.broadcasted_iota(jnp.int32, d.shape, 0).astype(jnp.float32)
    idx_f = jnp.min(jnp.where(d <= dmin, rows_f, jnp.float32(K)),
                    axis=0, keepdims=True)                                # (1, tn)
    onehot = (rows_f == idx_f).astype(jnp.float32)                        # (K, tn)

    # Decoder folded into the codebook: xr = (w_dec^T cb^T) @ onehot + b_dec^T.
    # Only contraction is over K = 128 -> MXU friendly.
    xr = jnp.dot(dcb_ref[...], onehot,
                 preferred_element_type=jnp.float32) + bd_ref[...]        # (C, tn)

    xr_ref[...] = xr
    idx_ref[...] = idx_f.astype(jnp.int32)

    # Codebook-usage histogram on the MXU (contract over the tn lanes), keeping
    # the XLU free for the two sublane-min passes above.
    ones_col = jnp.ones((tn, 1), jnp.float32)
    hist_part = jnp.dot(onehot, ones_col, preferred_element_type=jnp.float32)
    hist_ref[...] += hist_part.reshape(1, K, 1)

    # Per-parallel-slice MSE partial sum (reduced in the wrapper).
    diff = xr - x
    mse_ref[...] += jnp.sum(diff * diff, keepdims=True).reshape(1, 1, 1)


# ----------------------------------------------------------------------------
# pallas_call wrapper
# ----------------------------------------------------------------------------
def fused_opt_vqae_call(x_cn, score_w, score_b, dec_cb, b_dec_t, tn, n_par):
    C, N = x_cn.shape
    K = score_w.shape[0]
    n_tiles = N // tn
    n_inner = n_tiles // n_par

    def io_map(p, i):
        return (0, p * n_inner + i)

    return pl.pallas_call(
        fused_vqae_kernel,
        out_shape=(
            jax.ShapeDtypeStruct((C, N), jnp.float32),       # x_reconst (chan-major)
            jax.ShapeDtypeStruct((1, N), jnp.int32),         # argmin indices
            jax.ShapeDtypeStruct((n_par, K, 1), jnp.float32),  # usage hist partials
            jax.ShapeDtypeStruct((n_par, 1, 1), jnp.float32),  # sum((xr-x)^2) partials
        ),
        grid_spec=pltpu.PrefetchScalarGridSpec(
            num_scalar_prefetch=0,
            grid=(n_par, n_inner),
            in_specs=[
                pl.BlockSpec((C, tn), io_map),               # x tile
                pl.BlockSpec((K, C), lambda p, i: (0, 0)),   # -2 cb@w_enc^T  (resident)
                pl.BlockSpec((K, 1), lambda p, i: (0, 0)),   # ||cb||^2-2cb@b_enc^T
                pl.BlockSpec((C, K), lambda p, i: (0, 0)),   # w_dec^T cb^T   (resident)
                pl.BlockSpec((C, 1), lambda p, i: (0, 0)),   # b_dec^T        (resident)
            ],
            out_specs=[
                pl.BlockSpec((C, tn), io_map),
                pl.BlockSpec((1, tn), io_map),
                pl.BlockSpec((1, K, 1), lambda p, i: (p, 0, 0)),  # per-slice accumulator
                pl.BlockSpec((1, 1, 1), lambda p, i: (p, 0, 0)),  # per-slice accumulator
            ],
        ),
        # Outer axis is "parallel" (disjoint outputs per p -> v7x megacore can
        # shard it); inner axis carries the resident accumulators -> "arbitrary".
        compiler_params=pltpu.CompilerParams(
            dimension_semantics=("parallel", "arbitrary"),
            vmem_limit_bytes=32 * 1024 * 1024,
        ),
    )(x_cn, score_w, score_b, dec_cb, b_dec_t)


# ----------------------------------------------------------------------------
# OPT_VQAE forward (inference path: flg_train=False)
# ----------------------------------------------------------------------------
def opt_vqae_forward(real_images, params, tn=2048):
    B, C, H, W = real_images.shape
    K, D = params["codebook"].shape
    N = B * H * W

    # NCHW -> (C, N_pix), pixel order n = b*H*W + h*W + w (matches
    # z.permute(0,2,3,1).view(-1, D) ordering used by the quantizer).
    x_cn = jnp.transpose(real_images, (1, 0, 2, 3)).reshape(C, N).astype(jnp.float32)

    tn = min(tn, N)
    assert N % tn == 0 and tn % 128 == 0, "pixel count must tile by 128-lane blocks"
    n_tiles = N // tn
    n_par = 2 if (n_tiles >= 2 and n_tiles % 2 == 0) else 1

    cb = params["codebook"].astype(jnp.float32)        # (K, D)
    w_enc = params["w_enc"].astype(jnp.float32)        # (C, D)
    b_enc = params["b_enc"].astype(jnp.float32)        # (1, D)
    w_dec = params["w_dec"].astype(jnp.float32)        # (D, C)
    b_dec = params["b_dec"].astype(jnp.float32)        # (1, C)

    # Encoder + ||cb||^2 folded into the distance surrogate (per-pixel ||z||^2
    # dropped: constant in k, argmin-invariant).
    score_w = -2.0 * (cb @ w_enc.T)                                     # (K, C)
    score_b = jnp.sum(cb * cb, axis=1, keepdims=True) - 2.0 * (cb @ b_enc.T)  # (K, 1)
    # Decoder folded into the codebook.
    dec_cb = w_dec.T @ cb.T                                             # (C, K)
    b_dec_t = b_dec.T                                                   # (C, 1)

    xr_cn, idx_1n, hist, mse_parts = fused_opt_vqae_call(
        x_cn, score_w, score_b, dec_cb, b_dec_t, tn=tn, n_par=n_par)

    x_reconst = jnp.transpose(xr_cn.reshape(C, B, H, W), (1, 0, 2, 3))
    e_indices = idx_1n.reshape(N, 1)                     # (N, 1) int32

    # One-hot encodings materialized downstream, directly in (N, K) and as int8
    # (values are exactly 0/1); widen with .astype(jnp.float32) only if a
    # consumer actually needs a float one-hot.
    min_encodings = jax.nn.one_hot(idx_1n[0], K, dtype=jnp.int8)        # (N, K)

    mse = jnp.sum(mse_parts) / jnp.float32(N * C)

    avg_probs = jnp.sum(hist, axis=0)[:, 0] / jnp.float32(N)            # (K,)
    perplexity = jnp.exp(-jnp.sum(avg_probs * jnp.log(avg_probs + 1e-10)))

    loss = dict(all=mse, mse=mse, perplexity=perplexity)
    return x_reconst, min_encodings, e_indices, loss


# ----------------------------------------------------------------------------
# pure-JAX reference for the sanity check
# ----------------------------------------------------------------------------
def opt_vqae_forward_ref(real_images, params):
    B, C, H, W = real_images.shape
    xf = jnp.transpose(real_images, (0, 2, 3, 1)).reshape(-1, C)
    z = xf @ params["w_enc"] + params["b_enc"]
    cb = params["codebook"]
    d = (jnp.sum(z * z, -1, keepdims=True) + jnp.sum(cb * cb, -1)[None, :]
         - 2.0 * z @ cb.T)
    idx = jnp.argmin(d, axis=-1)
    onehot = jax.nn.one_hot(idx, cb.shape[0], dtype=jnp.float32)
    zq = onehot @ cb
    xr = zq @ params["w_dec"] + params["b_dec"]
    mse = jnp.mean((xr - xf) ** 2)
    x_reconst = jnp.transpose(xr.reshape(B, H, W, C), (0, 3, 1, 2))
    return x_reconst, idx.astype(jnp.int32), d, mse


# ----------------------------------------------------------------------------
if __name__ == "__main__":
    # small shapes consistent with the module's forward
    B, C, H, W = 2, 4, 16, 16          # dim_x = 4 channels
    dim_dict = 32                      # cfgs.quantization.dim_dict
    size_dict = 128                    # cfgs.quantization.size_dict
    partition = 1                      # cfgs.quantization.partition
    N = B * H * W

    key = jax.random.PRNGKey(0)
    k_enc, k_dec, k_cb, k_x = jax.random.split(key, 4)

    params = {
        # Conv weights: nn.init.normal_(w, 0.0, 0.02) per weights_init
        "w_enc": 0.02 * jax.random.normal(k_enc, (C, dim_dict), jnp.float32),
        "b_enc": jnp.zeros((1, dim_dict), jnp.float32),
        "w_dec": 0.02 * jax.random.normal(k_dec, (dim_dict, C), jnp.float32),
        "b_dec": jnp.zeros((1, C), jnp.float32),
        # non-OTP codebook: torch.randn(size_dict, dim_dict)
        "codebook": jax.random.normal(k_cb, (size_dict, dim_dict), jnp.float32),
        # codebook_weight exists in __init__ but is unused in _inference
        "codebook_weight": jnp.ones((partition, size_dict), jnp.float32) / size_dict,
    }

    x = jax.random.normal(k_x, (B, C, H, W), jnp.float32)

    # tn=128 -> 4 tiles -> grid (2 parallel, 2 arbitrary): exercises the
    # accumulator init/flush and the megacore-shaped grid.
    x_reconst, min_encodings, e_indices, loss = jax.block_until_ready(
        opt_vqae_forward(x, params, tn=128))

    # --- sanity checks vs. pure-JAX reference ------------------------------
    xr_ref, idx_ref, d_ref, mse_ref = opt_vqae_forward_ref(x, params)
    assert x_reconst.shape == (B, C, H, W)
    assert min_encodings.shape == (N, size_dict)
    assert e_indices.shape == (N, 1)

    idx_k = e_indices[:, 0]
    # tie-tolerant index check: the kernel's chosen codeword must achieve the
    # reference minimum distance up to rounding (encoder/decoder folding
    # reassociates the sums, which can flip exact ties).
    d_min = jnp.min(d_ref, axis=1)
    d_at_k = jnp.take_along_axis(d_ref, idx_k[:, None], axis=1)[:, 0]
    assert bool(jnp.all(d_at_k - d_min <= 1e-4 * (1.0 + jnp.abs(d_min))))
    # the overwhelming majority of pixels should match the reference exactly
    assert float(jnp.mean((idx_k == idx_ref).astype(jnp.float32))) > 0.99

    # reconstruction check: reference decoder applied to the kernel's indices
    zq_k = params["codebook"][idx_k]
    xr_from_idx = zq_k @ params["w_dec"] + params["b_dec"]
    xr_from_idx = jnp.transpose(xr_from_idx.reshape(B, H, W, C), (0, 3, 1, 2))
    assert jnp.allclose(x_reconst, xr_from_idx, rtol=1e-4, atol=1e-4)

    # fused MSE / histogram reductions
    mse_check = jnp.mean((x_reconst - x) ** 2)
    assert jnp.allclose(loss["mse"], mse_check, rtol=1e-5, atol=1e-7)
    counts = jnp.sum(jax.nn.one_hot(idx_k, size_dict, dtype=jnp.float32), axis=0)
    avg = counts / N
    perp_check = jnp.exp(-jnp.sum(avg * jnp.log(avg + 1e-10)))
    assert jnp.allclose(loss["perplexity"], perp_check, rtol=1e-5, atol=1e-5)

    # one-hot encodings consistent with the returned indices
    assert bool(jnp.all(min_encodings.astype(jnp.int32)
                        == jax.nn.one_hot(idx_k, size_dict, dtype=jnp.int32)))

    # degenerate single-tile grid (default tn) must agree with the tiled run
    xr_b, enc_b, idx_b, loss_b = jax.block_until_ready(
        opt_vqae_forward(x, params))
    assert bool(jnp.all(idx_b == e_indices))
    assert jnp.allclose(xr_b, x_reconst, rtol=1e-5, atol=1e-6)
    assert jnp.allclose(loss_b["mse"], loss["mse"], rtol=1e-5, atol=1e-7)

    print("KERNEL_OK")
</pallas_src>

<mosaic_0001>
module attributes {stable_mosaic.version = 11 : i64} {
  func.func @fused_vqae_kernel(%arg0: i32, %arg1: i32, %arg2: memref<4x128xf32, #tpu.memory_space<vmem>>, %arg3: memref<128x4xf32, #tpu.memory_space<vmem>>, %arg4: memref<128x1xf32, #tpu.memory_space<vmem>>, %arg5: memref<4x128xf32, #tpu.memory_space<vmem>>, %arg6: memref<4x1xf32, #tpu.memory_space<vmem>>, %arg7: memref<4x128xf32, #tpu.memory_space<vmem>>, %arg8: memref<1x128xi32, #tpu.memory_space<vmem>>, %arg9: memref<1x128x1xf32, #tpu.memory_space<vmem>>, %arg10: memref<1x1x1xf32, #tpu.memory_space<vmem>>) attributes {dimension_semantics = [#tpu.dimension_semantics<parallel>, #tpu.dimension_semantics<arbitrary>], iteration_bounds = array<i64: 2, 2>, scalar_prefetch = 0 : i64, scratch_operands = 0 : i64, tpu.core_type = #tpu.core_type<tc>, window_params = [{transform_indices = @transform_0, window_bounds = array<i64: 4, 128>}, {pipeline_mode = #tpu.pipeline_mode<synchronous>, transform_indices = @transform_1, window_bounds = array<i64: 128, 4>}, {pipeline_mode = #tpu.pipeline_mode<synchronous>, transform_indices = @transform_2, window_bounds = array<i64: 128, 1>}, {pipeline_mode = #tpu.pipeline_mode<synchronous>, transform_indices = @transform_3, window_bounds = array<i64: 4, 128>}, {pipeline_mode = #tpu.pipeline_mode<synchronous>, transform_indices = @transform_4, window_bounds = array<i64: 4, 1>}, {transform_indices = @transform_5, window_bounds = array<i64: 4, 128>}, {transform_indices = @transform_6, window_bounds = array<i64: 1, 128>}, {transform_indices = @transform_7, window_bounds = array<i64: 1, 128, 1>}, {transform_indices = @transform_8, window_bounds = array<i64: 1, 1, 1>}]} {
    %c0_i32 = arith.constant 0 : i32
    %0 = arith.cmpi eq, %arg1, %c0_i32 : i32
    %1 = arith.extui %0 : i1 to i32
    %c0_i32_0 = arith.constant 0 : i32
    %2 = arith.cmpi ne, %1, %c0_i32_0 : i32
    scf.if %2 {
      %cst_32 = arith.constant 0.000000e+00 : f32
      %70 = vector.broadcast %cst_32 : f32 to vector<1x128x1xf32>
      %c0_33 = arith.constant 0 : index
      %c0_34 = arith.constant 0 : index
      %c0_35 = arith.constant 0 : index
      %71 = vector.load %arg9[%c0_33, %c0_34, %c0_35] : memref<1x128x1xf32, #tpu.memory_space<vmem>>, vector<1x128x1xf32>
      tpu.vector_store %arg9[%c0_33, %c0_34, %c0_35], %70 {strides = array<i32>} : memref<1x128x1xf32, #tpu.memory_space<vmem>>, vector<1x128x1xf32>,
      %cst_36 = arith.constant 0.000000e+00 : f32
      %72 = vector.broadcast %cst_36 : f32 to vector<1x1x1xf32>
      %c0_37 = arith.constant 0 : index
      %c0_38 = arith.constant 0 : index
      %c0_39 = arith.constant 0 : index
      %73 = vector.load %arg10[%c0_37, %c0_38, %c0_39] : memref<1x1x1xf32, #tpu.memory_space<vmem>>, vector<1x1x1xf32>
      tpu.vector_store %arg10[%c0_37, %c0_38, %c0_39], %72 {strides = array<i32>} : memref<1x1x1xf32, #tpu.memory_space<vmem>>, vector<1x1x1xf32>,
    } else {
    }
    %c0 = arith.constant 0 : index
    %c0_1 = arith.constant 0 : index
    %3 = vector.load %arg2[%c0, %c0_1] : memref<4x128xf32, #tpu.memory_space<vmem>>, vector<4x128xf32>
    %c0_2 = arith.constant 0 : index
    %c0_3 = arith.constant 0 : index
    %4 = vector.load %arg3[%c0_2, %c0_3] : memref<128x4xf32, #tpu.memory_space<vmem>>, vector<128x4xf32>
    %c0_4 = arith.constant 0 : index
    %c0_5 = arith.constant 0 : index
    %5 = vector.load %arg4[%c0_4, %c0_5] : memref<128x1xf32, #tpu.memory_space<vmem>>, vector<128x1xf32>
    %6 = vector.extract_strided_slice %4 {offsets = [0, 0], sizes = [128, 1], strides = [1, 1]} : vector<128x4xf32> to vector<128x1xf32>
    %7 = vector.extract_strided_slice %3 {offsets = [0, 0], sizes = [1, 128], strides = [1, 1]} : vector<4x128xf32> to vector<1x128xf32>
    %8 = vector.broadcast %6 : vector<128x1xf32> to vector<128x128xf32>
    %9 = vector.broadcast %7 : vector<1x128xf32> to vector<128x128xf32>
    %10 = arith.mulf %8, %9 : vector<128x128xf32>
    %11 = vector.broadcast %5 : vector<128x1xf32> to vector<128x128xf32>
    %12 = arith.addf %11, %10 : vector<128x128xf32>
    %13 = vector.extract_strided_slice %4 {offsets = [0, 1], sizes = [128, 1], strides = [1, 1]} : vector<128x4xf32> to vector<128x1xf32>
    %14 = vector.extract_strided_slice %3 {offsets = [1, 0], sizes = [1, 128], strides = [1, 1]} : vector<4x128xf32> to vector<1x128xf32>
    %15 = vector.broadcast %13 : vector<128x1xf32> to vector<128x128xf32>
    %16 = vector.broadcast %14 : vector<1x128xf32> to vector<128x128xf32>
    %17 = arith.mulf %15, %16 : vector<128x128xf32>
    %18 = arith.addf %12, %17 : vector<128x128xf32>
    %19 = vector.extract_strided_slice %4 {offsets = [0, 2], sizes = [128, 1], strides = [1, 1]} : vector<128x4xf32> to vector<128x1xf32>
    %20 = vector.extract_strided_slice %3 {offsets = [2, 0], sizes = [1, 128], strides = [1, 1]} : vector<4x128xf32> to vector<1x128xf32>
    %21 = vector.broadcast %19 : vector<128x1xf32> to vector<128x128xf32>
    %22 = vector.broadcast %20 : vector<1x128xf32> to vector<128x128xf32>
    %23 = arith.mulf %21, %22 : vector<128x128xf32>
    %24 = arith.addf %18, %23 : vector<128x128xf32>
    %25 = vector.extract_strided_slice %4 {offsets = [0, 3], sizes = [128, 1], strides = [1, 1]} : vector<128x4xf32> to vector<128x1xf32>
    %26 = vector.extract_strided_slice %3 {offsets = [3, 0], sizes = [1, 128], strides = [1, 1]} : vector<4x128xf32> to vector<1x128xf32>
    %27 = vector.broadcast %25 : vector<128x1xf32> to vector<128x128xf32>
    %28 = vector.broadcast %26 : vector<1x128xf32> to vector<128x128xf32>
    %29 = arith.mulf %27, %28 : vector<128x128xf32>
    %30 = arith.addf %24, %29 : vector<128x128xf32>
    %cst = arith.constant dense<0x7F800000> : vector<128xf32>
    %31 = vector.multi_reduction <minimumf>, %30, %cst [0] : vector<128x128xf32> to vector<128xf32>
    %32 = vector.shape_cast %31 : vector<128xf32> to vector<1x128xf32>
    %33 = tpu.iota {dimensions = array<i32: 0>} : vector<128x128xi32>
    %34 = arith.sitofp %33 : vector<128x128xi32> to vector<128x128xf32>
    %35 = vector.broadcast %32 : vector<1x128xf32> to vector<128x128xf32>
    %36 = arith.cmpf ole, %30, %35 : vector<128x128xf32>
    %cst_6 = arith.constant 1.280000e+02 : f32
    %37 = vector.broadcast %cst_6 : f32 to vector<128x128xf32>
    %38 = arith.select %36, %34, %37 : vector<128x128xi1>, vector<128x128xf32>
    %cst_7 = arith.constant dense<0x7F800000> : vector<128xf32>
    %39 = vector.multi_reduction <minimumf>, %38, %cst_7 [0] : vector<128x128xf32> to vector<128xf32>
    %40 = vector.shape_cast %39 : vector<128xf32> to vector<1x128xf32>
    %41 = vector.broadcast %40 : vector<1x128xf32> to vector<128x128xf32>
    %42 = arith.cmpf oeq, %34, %41 : vector<128x128xf32>
    %43 = arith.extui %42 : vector<128x128xi1> to vector<128x128xi32>
    %44 = arith.sitofp %43 : vector<128x128xi32> to vector<128x128xf32>
    %c0_8 = arith.constant 0 : index
    %c0_9 = arith.constant 0 : index
    %45 = vector.load %arg5[%c0_8, %c0_9] : memref<4x128xf32, #tpu.memory_space<vmem>>, vector<4x128xf32>
    %cst_10 = arith.constant dense<0.000000e+00> : vector<4x128xf32>
    %46 = tpu.matmul %45, %44, %cst_10 {dimension_numbers = #tpu.dot_dimension_numbers<[1], [0], [0], [1], [0, 0, 1, 1], [], []>} : vector<4x128xf32>, vector<128x128xf32>, vector<4x128xf32> -> vector<4x128xf32>
    %c0_11 = arith.constant 0 : index
    %c0_12 = arith.constant 0 : index
    %47 = vector.load %arg6[%c0_11, %c0_12] : memref<4x1xf32, #tpu.memory_space<vmem>>, vector<4x1xf32>
    %48 = vector.broadcast %47 : vector<4x1xf32> to vector<4x128xf32>
    %49 = arith.addf %46, %48 : vector<4x128xf32>
    %c0_13 = arith.constant 0 : index
    %c0_14 = arith.constant 0 : index
    %50 = vector.load %arg7[%c0_13, %c0_14] : memref<4x128xf32, #tpu.memory_space<vmem>>, vector<4x128xf32>
    tpu.vector_store %arg7[%c0_13, %c0_14], %49 {strides = array<i32>} : memref<4x128xf32, #tpu.memory_space<vmem>>, vector<4x128xf32>,
    %51 = arith.fptosi %40 : vector<1x128xf32> to vector<1x128xi32>
    %c0_15 = arith.constant 0 : index
    %c0_16 = arith.constant 0 : index
    %52 = vector.load %arg8[%c0_15, %c0_16] : memref<1x128xi32, #tpu.memory_space<vmem>>, vector<1x128xi32>
    tpu.vector_store %arg8[%c0_15, %c0_16], %51 {strides = array<i32>} : memref<1x128xi32, #tpu.memory_space<vmem>>, vector<1x128xi32>,
    %cst_17 = arith.constant 1.000000e+00 : f32
    %53 = vector.broadcast %cst_17 : f32 to vector<128x1xf32>
    %cst_18 = arith.constant dense<0.000000e+00> : vector<128x1xf32>
    %54 = tpu.matmul %44, %53, %cst_18 {dimension_numbers = #tpu.dot_dimension_numbers<[1], [0], [0], [1], [0, 0, 1, 1], [], []>} : vector<128x128xf32>, vector<128x1xf32>, vector<128x1xf32> -> vector<128x1xf32>
    %c0_19 = arith.constant 0 : index
    %c0_20 = arith.constant 0 : index
    %c0_21 = arith.constant 0 : index
    %55 = vector.load %arg9[%c0_19, %c0_20, %c0_21] : memref<1x128x1xf32, #tpu.memory_space<vmem>>, vector<1x128x1xf32>
    %56 = vector.shape_cast %54 : vector<128x1xf32> to vector<1x128x1xf32>
    %57 = arith.addf %55, %56 : vector<1x128x1xf32>
    %c0_22 = arith.constant 0 : index
    %c0_23 = arith.constant 0 : index
    %c0_24 = arith.constant 0 : index
    %58 = vector.load %arg9[%c0_22, %c0_23, %c0_24] : memref<1x128x1xf32, #tpu.memory_space<vmem>>, vector<1x128x1xf32>
    tpu.vector_store %arg9[%c0_22, %c0_23, %c0_24], %57 {strides = array<i32>} : memref<1x128x1xf32, #tpu.memory_space<vmem>>, vector<1x128x1xf32>,
    %59 = arith.subf %49, %3 : vector<4x128xf32>
    %c0_25 = arith.constant 0 : index
    %c0_26 = arith.constant 0 : index
    %c0_27 = arith.constant 0 : index
    %60 = vector.load %arg10[%c0_25, %c0_26, %c0_27] : memref<1x1x1xf32, #tpu.memory_space<vmem>>, vector<1x1x1xf32>
    %61 = arith.mulf %59, %59 : vector<4x128xf32>
    %62 = vector.shape_cast %61 : vector<4x128xf32> to vector<1x4x128xf32>
    %cst_28 = arith.constant dense<0.000000e+00> : vector<1xf32>
    %63 = vector.multi_reduction <add>, %62, %cst_28 [1, 2] : vector<1x4x128xf32> to vector<1xf32>
    %64 = vector.shape_cast %63 : vector<1xf32> to vector<1x1x1xf32>
    %65 = vector.extract %64[0, 0, 0] : f32 from vector<1x1x1xf32>
    %66 = vector.broadcast %65 : f32 to vector<1x1xf32>
    %67 = vector.shape_cast %66 : vector<1x1xf32> to vector<1x1x1xf32>
    %68 = arith.addf %60, %67 : vector<1x1x1xf32>
    %c0_29 = arith.constant 0 : index
    %c0_30 = arith.constant 0 : index
    %c0_31 = arith.constant 0 : index
    %69 = vector.load %arg10[%c0_29, %c0_30, %c0_31] : memref<1x1x1xf32, #tpu.memory_space<vmem>>, vector<1x1x1xf32>
    tpu.vector_store %arg10[%c0_29, %c0_30, %c0_31], %68 {strides = array<i32>} : memref<1x1x1xf32, #tpu.memory_space<vmem>>, vector<1x1x1xf32>,
    return
  }
  func.func @transform_0(%arg0: i32, %arg1: i32) -> (i32, i32) {
    %c2_i32 = arith.constant 2 : i32
    %0 = arith.muli %arg0, %c2_i32 : i32
    %1 = arith.addi %0, %arg1 : i32
    %c0_i32 = arith.constant 0 : i32
    %c0_i32_0 = arith.constant 0 : i32
    return %c0_i32, %1 : i32, i32
  }
  func.func @transform_1(%arg0: i32, %arg1: i32) -> (i32, i32) {
    %c0_i32 = arith.constant 0 : i32
    %c0_i32_0 = arith.constant 0 : i32
    %c0_i32_1 = arith.constant 0 : i32
    return %c0_i32, %c0_i32_0 : i32, i32
  }
  func.func @transform_2(%arg0: i32, %arg1: i32) -> (i32, i32) {
    %c0_i32 = arith.constant 0 : i32
    %c0_i32_0 = arith.constant 0 : i32
    %c0_i32_1 = arith.constant 0 : i32
    return %c0_i32, %c0_i32_0 : i32, i32
  }
  func.func @transform_3(%arg0: i32, %arg1: i32) -> (i32, i32) {
    %c0_i32 = arith.constant 0 : i32
    %c0_i32_0 = arith.constant 0 : i32
    %c0_i32_1 = arith.constant 0 : i32
    return %c0_i32, %c0_i32_0 : i32, i32
  }
  func.func @transform_4(%arg0: i32, %arg1: i32) -> (i32, i32) {
    %c0_i32 = arith.constant 0 : i32
    %c0_i32_0 = arith.constant 0 : i32
    %c0_i32_1 = arith.constant 0 : i32
    return %c0_i32, %c0_i32_0 : i32, i32
  }
  func.func @transform_5(%arg0: i32, %arg1: i32) -> (i32, i32) {
    %c2_i32 = arith.constant 2 : i32
    %0 = arith.muli %arg0, %c2_i32 : i32
    %1 = arith.addi %0, %arg1 : i32
    %c0_i32 = arith.constant 0 : i32
    %c0_i32_0 = arith.constant 0 : i32
    return %c0_i32, %1 : i32, i32
  }
  func.func @transform_6(%arg0: i32, %arg1: i32) -> (i32, i32) {
    %c2_i32 = arith.constant 2 : i32
    %0 = arith.muli %arg0, %c2_i32 : i32
    %1 = arith.addi %0, %arg1 : i32
    %c0_i32 = arith.constant 0 : i32
    %c0_i32_0 = arith.constant 0 : i32
    return %c0_i32, %1 : i32, i32
  }
  func.func @transform_7(%arg0: i32, %arg1: i32) -> (i32, i32, i32) {
    %c0_i32 = arith.constant 0 : i32
    %c0_i32_0 = arith.constant 0 : i32
    %c0_i32_1 = arith.constant 0 : i32
    return %arg0, %c0_i32, %c0_i32_0 : i32, i32, i32
  }
  func.func @transform_8(%arg0: i32, %arg1: i32) -> (i32, i32, i32) {
    %c0_i32 = arith.constant 0 : i32
    %c0_i32_0 = arith.constant 0 : i32
    %c0_i32_1 = arith.constant 0 : i32
    return %arg0, %c0_i32, %c0_i32_0 : i32, i32, i32
  }
}

</mosaic_0001>

<llo_original>
// kernel: tpu_custom_call.1
$region0: #{tpu_custom_call.1}
  #allocation0 [shape = 'u32[]', space=smem, size = 0x4, offset = 0x4, fixed_abs, tag = 'smem constant byte address 0x4 - core index']
  #allocation1 [shape = 'u32[72,128]{1,0:T(1,128)}', space=vmem, size = 0x9000, scoped, tag = 'internal scratch']
  %s0 = inlined_call_operand.vmem [shape: f32[4,512], index: 0, kind: input, shape index: {}]
  %s1 = inlined_call_operand.vmem [shape: f32[128,4], index: 1, kind: input, shape index: {}]
  %s2 = inlined_call_operand.vmem [shape: f32[128,1], index: 2, kind: input, shape index: {}]
  %s3 = inlined_call_operand.vmem [shape: f32[4,128], index: 3, kind: input, shape index: {}]
  %s4 = inlined_call_operand.vmem [shape: f32[4,1], index: 4, kind: input, shape index: {}]
  %s5 = inlined_call_operand.hbm [shape: f32[4,512], index: 5, kind: output, shape index: {0}]
  %s6 = inlined_call_operand.hbm [shape: s32[1,512], index: 6, kind: output, shape index: {1}]
  %s7 = inlined_call_operand.vmem [shape: f32[2,128,1], index: 7, kind: output, shape index: {2}]
  %s8 = inlined_call_operand.vmem [shape: f32[2,1,1], index: 8, kind: output, shape index: {3}]
  %9 = xla_tuple %s5, %s6, %s7, %s8
  %s10 = sld [smem:[#allocation0]]
  $region81: #{tpu_custom_call.1} parent=0
    _
  %s12 = ssub.s32 1, %s10
  %s13 = scalar_select 0, %s12, %s10
  $region1: #{tpu_custom_call.1} parent=0
    #allocation2 [shape = 'u8[4096]{0}', space=vmem, size = 0x1000, scoped, tag = 'output window, operand 0']
    #allocation3 [shape = 's32[2]{0}', space=sflag, size = 0x8, scoped, tag = 'scoped memory for tpu_custom_call.1']
    #allocation4 [shape = 'u8[1024]{0}', space=vmem, size = 0x400, scoped, tag = 'output window, operand 1']
    #allocation5 [shape = 's32[2]{0}', space=sflag, size = 0x8, scoped, tag = 'scoped memory for tpu_custom_call.1']
    %14 = vsyncpa [#allocation3], 0
    %s15 = scalar_lea.sflag [#allocation3], 1
    %16 = vsyncpa %s15, 0
    %17 = vsyncpa [#allocation5], 0
    %s18 = scalar_lea.sflag [#allocation5], 1
    %19 = vsyncpa %s18, 0
    loop: start=0, step=1, limit=6
    $region2: #{tpu_custom_call.1} parent=1 // loop_pre_header
      _
    $region3: #{tpu_custom_call.1} parent=1 // loop_header
      %s21 = sphi 0, %s25
      %p22 = scmp.ge.s32.totalorder %s21, 6
      %s28 = sphi 0, %s40
      %s29 = sphi 0, %s36
      %s30 = sphi 0, %s28
      %s31 = sphi 0, %s29
      %s32 = sphi 0, %s30
      %s33 = sphi 0, %s31
      %s47 = sphi 0, %s49
      %s50 = sphi 0, %s47
      %s51 = sphi 0, %s50
      %s67 = sphi 0, %s51
      %s71 = sphi 0, %s71
      %s73 = sphi 0, %s71
      %s74 = sphi 0, %s73
      %s88 = sphi 0, %s74
      %s92 = sphi 0, %s92
      %s94 = sphi 0, %s92
      %s95 = sphi 0, %s94
      %s109 = sphi 0, %s95
      %s113 = sphi 0, %s113
      %s115 = sphi 0, %s113
      %s116 = sphi 0, %s115
      %s130 = sphi 0, %s116
      %s134 = sphi 0, %s134
      %s136 = sphi 0, %s134
      %s137 = sphi 0, %s136
      %s151 = sphi 0, %s137
      %s161 = sphi 0, %s163
      %s164 = sphi 0, %s161
      %s165 = sphi 0, %s164
      %s181 = sphi 0, %s165
      %s191 = sphi 0, %s193
      %s194 = sphi 0, %s191
      %s195 = sphi 0, %s194
      %s211 = sphi 0, %s195
      %s217 = sphi 0, %s219
      %s220 = sphi 0, %s217
      %s221 = sphi 0, %s220
      %s237 = sphi 0, %s221
      %s243 = sphi 0, %s245
      %s246 = sphi 0, %s243
      %s247 = sphi 0, %s246
      %s263 = sphi 0, %s247
    $region4: #{tpu_custom_call.1} parent=1 // loop_header_branch
      %24 = sbr.rel (%p22) target = $region8
    $region5: #{tpu_custom_call.1} parent=1 // loop_body
      %s26 = ssub.s32 %s21, 1
      %s27 = ssub.s32 %s21, 2
      %s34 = sadd.s32 1, %s29
      %p35 = scmp.ge.s32.totalorder %s34, 2
      %s36 = scalar_select %p35, 0, %s34
      %s37 = sadd.s32 1, %s28
      %s38 = scalar_select %p35, %s37, %s28
      %p39 = scmp.ge.s32.totalorder %s38, 2
      %s40 = scalar_select %p39, 0, %s38
      %s41 = smul.u32 %s28, 2
      %s42 = sadd.s32 %s41, %s29
      %s43 = smul.u32 %s40, 2
      %s44 = sadd.s32 %s43, %s36
      %s45 = ssub.s32 %s42, %s44
      %p46 = scmp.eq.s32.totalorder %s45, 0
      %s48 = sadd.s32 %s47, 1
      %s49 = scalar_select %p46, %s47, %s48
      %p52 = pneg %p46
      %p53 = scmp.eq.s32.totalorder %s21, 3
      %p54 = por %p52, %p53
      %p55 = scmp.ne.s32.totalorder %s47, %s50
      %p56 = scmp.eq.s32.totalorder %s21, 0
      %p57 = por %p55, %p56
      %p58 = scmp.ne.s32.totalorder %s47, %s50
      %p59 = scmp.eq.s32.totalorder %s26, 3
      %p60 = por %p58, %p59
      %p61 = scmp.ne.s32.totalorder %s50, %s51
      %p62 = scmp.eq.s32.totalorder %s26, 0
      %p63 = por %p61, %p62
      %p64 = scmp.ne.s32.totalorder %s50, %s51
      %p65 = scmp.eq.s32.totalorder %s27, 3
      %p66 = por %p64, %p65
      %p68 = scmp.ne.s32.totalorder %s51, %s67
      %p69 = scmp.eq.s32.totalorder %s27, 0
      %p70 = por %p68, %p69
      %s72 = sadd.s32 %s71, 1
      %p75 = scmp.eq.s32.totalorder %s21, 3
      %p76 = scmp.ne.s32.totalorder %s71, %s73
      %p77 = scmp.eq.s32.totalorder %s21, 0
      %p78 = por %p76, %p77
      %p79 = scmp.ne.s32.totalorder %s71, %s73
      %p80 = scmp.eq.s32.totalorder %s26, 3
      %p81 = por %p79, %p80
      %p82 = scmp.ne.s32.totalorder %s73, %s74
      %p83 = scmp.eq.s32.totalorder %s26, 0
      %p84 = por %p82, %p83
      %p85 = scmp.ne.s32.totalorder %s73, %s74
      %p86 = scmp.eq.s32.totalorder %s27, 3
      %p87 = por %p85, %p86
      %p89 = scmp.ne.s32.totalorder %s74, %s88
      %p90 = scmp.eq.s32.totalorder %s27, 0
      %p91 = por %p89, %p90
      %s93 = sadd.s32 %s92, 1
      %p96 = scmp.eq.s32.totalorder %s21, 3
      %p97 = scmp.ne.s32.totalorder %s92, %s94
      %p98 = scmp.eq.s32.totalorder %s21, 0
      %p99 = por %p97, %p98
      %p100 = scmp.ne.s32.totalorder %s92, %s94
      %p101 = scmp.eq.s32.totalorder %s26, 3
      %p102 = por %p100, %p101
      %p103 = scmp.ne.s32.totalorder %s94, %s95
      %p104 = scmp.eq.s32.totalorder %s26, 0
      %p105 = por %p103, %p104
      %p106 = scmp.ne.s32.totalorder %s94, %s95
      %p107 = scmp.eq.s32.totalorder %s27, 3
      %p108 = por %p106, %p107
      %p110 = scmp.ne.s32.totalorder %s95, %s109
      %p111 = scmp.eq.s32.totalorder %s27, 0
      %p112 = por %p110, %p111
      %s114 = sadd.s32 %s113, 1
      %p117 = scmp.eq.s32.totalorder %s21, 3
      %p118 = scmp.ne.s32.totalorder %s113, %s115
      %p119 = scmp.eq.s32.totalorder %s21, 0
      %p120 = por %p118, %p119
      %p121 = scmp.ne.s32.totalorder %s113, %s115
      %p122 = scmp.eq.s32.totalorder %s26, 3
      %p123 = por %p121, %p122
      %p124 = scmp.ne.s32.totalorder %s115, %s116
      %p125 = scmp.eq.s32.totalorder %s26, 0
      %p126 = por %p124, %p125
      %p127 = scmp.ne.s32.totalorder %s115, %s116
      %p128 = scmp.eq.s32.totalorder %s27, 3
      %p129 = por %p127, %p128
      %p131 = scmp.ne.s32.totalorder %s116, %s130
      %p132 = scmp.eq.s32.totalorder %s27, 0
      %p133 = por %p131, %p132
      %s135 = sadd.s32 %s134, 1
      %p138 = scmp.eq.s32.totalorder %s21, 3
      %p139 = scmp.ne.s32.totalorder %s134, %s136
      %p140 = scmp.eq.s32.totalorder %s21, 0
      %p141 = por %p139, %p140
      %p142 = scmp.ne.s32.totalorder %s134, %s136
      %p143 = scmp.eq.s32.totalorder %s26, 3
      %p144 = por %p142, %p143
      %p145 = scmp.ne.s32.totalorder %s136, %s137
      %p146 = scmp.eq.s32.totalorder %s26, 0
      %p147 = por %p145, %p146
      %p148 = scmp.ne.s32.totalorder %s136, %s137
      %p149 = scmp.eq.s32.totalorder %s27, 3
      %p150 = por %p148, %p149
      %p152 = scmp.ne.s32.totalorder %s137, %s151
      %p153 = scmp.eq.s32.totalorder %s27, 0
      %p154 = por %p152, %p153
      %s155 = smul.u32 %s28, 2
      %s156 = sadd.s32 %s155, %s29
      %s157 = smul.u32 %s40, 2
      %s158 = sadd.s32 %s157, %s36
      %s159 = ssub.s32 %s156, %s158
      %p160 = scmp.eq.s32.totalorder %s159, 0
      %s162 = sadd.s32 %s161, 1
      %s163 = scalar_select %p160, %s161, %s162
      %p166 = pneg %p160
      %p167 = scmp.eq.s32.totalorder %s21, 3
      %p168 = por %p166, %p167
      %p169 = scmp.ne.s32.totalorder %s161, %s164
      %p170 = scmp.eq.s32.totalorder %s21, 0
      %p171 = por %p169, %p170
      %p172 = scmp.ne.s32.totalorder %s161, %s164
      %p173 = scmp.eq.s32.totalorder %s26, 3
      %p174 = por %p172, %p173
      %p175 = scmp.ne.s32.totalorder %s164, %s165
      %p176 = scmp.eq.s32.totalorder %s26, 0
      %p177 = por %p175, %p176
      %p178 = scmp.ne.s32.totalorder %s164, %s165
      %p179 = scmp.eq.s32.totalorder %s27, 3
      %p180 = por %p178, %p179
      %p182 = scmp.ne.s32.totalorder %s165, %s181
      %p183 = scmp.eq.s32.totalorder %s27, 0
      %p184 = por %p182, %p183
      %s185 = smul.u32 %s28, 2
      %s186 = sadd.s32 %s185, %s29
      %s187 = smul.u32 %s40, 2
      %s188 = sadd.s32 %s187, %s36
      %s189 = ssub.s32 %s186, %s188
      %p190 = scmp.eq.s32.totalorder %s189, 0
      %s192 = sadd.s32 %s191, 1
      %s193 = scalar_select %p190, %s191, %s192
      %p196 = pneg %p190
      %p197 = scmp.eq.s32.totalorder %s21, 3
      %p198 = por %p196, %p197
      %p199 = scmp.ne.s32.totalorder %s191, %s194
      %p200 = scmp.eq.s32.totalorder %s21, 0
      %p201 = por %p199, %p200
      %p202 = scmp.ne.s32.totalorder %s191, %s194
      %p203 = scmp.eq.s32.totalorder %s26, 3
      %p204 = por %p202, %p203
      %p205 = scmp.ne.s32.totalorder %s194, %s195
      %p206 = scmp.eq.s32.totalorder %s26, 0
      %p207 = por %p205, %p206
      %p208 = scmp.ne.s32.totalorder %s194, %s195
      %p209 = scmp.eq.s32.totalorder %s27, 3
      %p210 = por %p208, %p209
      %p212 = scmp.ne.s32.totalorder %s195, %s211
      %p213 = scmp.eq.s32.totalorder %s27, 0
      %p214 = por %p212, %p213
      %s215 = ssub.s32 %s28, %s40
      %p216 = scmp.eq.s32.totalorder %s215, 0
      %s218 = sadd.s32 %s217, 1
      %s219 = scalar_select %p216, %s217, %s218
      %p222 = pneg %p216
      %p223 = scmp.eq.s32.totalorder %s21, 3
      %p224 = por %p222, %p223
      %p225 = scmp.ne.s32.totalorder %s217, %s220
      %p226 = scmp.eq.s32.totalorder %s21, 0
      %p227 = por %p225, %p226
      %p228 = scmp.ne.s32.totalorder %s217, %s220
      %p229 = scmp.eq.s32.totalorder %s26, 3
      %p230 = por %p228, %p229
      %p231 = scmp.ne.s32.totalorder %s220, %s221
      %p232 = scmp.eq.s32.totalorder %s26, 0
      %p233 = por %p231, %p232
      %p234 = scmp.ne.s32.totalorder %s220, %s221
      %p235 = scmp.eq.s32.totalorder %s27, 3
      %p236 = por %p234, %p235
      %p238 = scmp.ne.s32.totalorder %s221, %s237
      %p239 = scmp.eq.s32.totalorder %s27, 0
      %p240 = por %p238, %p239
      %s241 = ssub.s32 %s28, %s40
      %p242 = scmp.eq.s32.totalorder %s241, 0
      %s244 = sadd.s32 %s243, 1
      %s245 = scalar_select %p242, %s243, %s244
      %p248 = pneg %p242
      %p249 = scmp.eq.s32.totalorder %s21, 3
      %p250 = por %p248, %p249
      %p251 = scmp.ne.s32.totalorder %s243, %s246
      %p252 = scmp.eq.s32.totalorder %s21, 0
      %p253 = por %p251, %p252
      %p254 = scmp.ne.s32.totalorder %s243, %s246
      %p255 = scmp.eq.s32.totalorder %s26, 3
      %p256 = por %p254, %p255
      %p257 = scmp.ne.s32.totalorder %s246, %s247
      %p258 = scmp.eq.s32.totalorder %s26, 0
      %p259 = por %p257, %p258
      %p260 = scmp.ne.s32.totalorder %s246, %s247
      %p261 = scmp.eq.s32.totalorder %s27, 3
      %p262 = por %p260, %p261
      %p264 = scmp.ne.s32.totalorder %s247, %s263
      %p265 = scmp.eq.s32.totalorder %s27, 0
      %p266 = por %p264, %p265
      %p267 = scmp.le.s32.totalorder 1, %s21
      %p268 = scmp.lt.s32.totalorder %s21, 5
      %p269 = pnand %p267, %p268
      %p270 = pneg %p269
      // Predicated region
      $region9: #{tpu_custom_call.1} parent=5 // pred_check
        _
      $region10: #{tpu_custom_call.1} parent=5 // pred_check_branch
        %272 = sbr.rel (%p269) target = $region12
      $region11: #{tpu_custom_call.1} parent=5 // pred_region
        %s273 = ssub.s32 %s21, 1
        // Predicated region
        $region13: #{tpu_custom_call.1} parent=11 // pred_check
          %p274 = pneg %p84
        $region14: #{tpu_custom_call.1} parent=11 // pred_check_branch
          %276 = sbr.rel (%p274) target = $region16
        $region15: #{tpu_custom_call.1} parent=11 // pred_region
          _
        $region16: #{tpu_custom_call.1} parent=11 // pred_fallthru
          _
        // Predicated region
        $region17: #{tpu_custom_call.1} parent=11 // pred_check
          %p277 = pneg %p105
        $region18: #{tpu_custom_call.1} parent=11 // pred_check_branch
          %279 = sbr.rel (%p277) target = $region20
        $region19: #{tpu_custom_call.1} parent=11 // pred_region
          _
        $region20: #{tpu_custom_call.1} parent=11 // pred_fallthru
          _
        // Predicated region
        $region21: #{tpu_custom_call.1} parent=11 // pred_check
          %p280 = pneg %p126
        $region22: #{tpu_custom_call.1} parent=11 // pred_check_branch
          %282 = sbr.rel (%p280) target = $region24
        $region23: #{tpu_custom_call.1} parent=11 // pred_region
          _
        $region24: #{tpu_custom_call.1} parent=11 // pred_fallthru
          _
        // Predicated region
        $region25: #{tpu_custom_call.1} parent=11 // pred_check
          %p283 = pneg %p147
        $region26: #{tpu_custom_call.1} parent=11 // pred_check_branch
          %285 = sbr.rel (%p283) target = $region28
        $region27: #{tpu_custom_call.1} parent=11 // pred_region
          _
        $region28: #{tpu_custom_call.1} parent=11 // pred_fallthru
          _
      $region12: #{tpu_custom_call.1} parent=5 // pred_fallthru
        _
      %p286 = scmp.lt.s32.totalorder %s21, 4
      // Predicated region
      $region29: #{tpu_custom_call.1} parent=5 // pred_check
        %p287 = pneg %p286
      $region30: #{tpu_custom_call.1} parent=5 // pred_check_branch
        %289 = sbr.rel (%p287) target = $region32
      $region31: #{tpu_custom_call.1} parent=5 // pred_region
        // Predicated region
        $region33: #{tpu_custom_call.1} parent=31 // pred_check
          %p290 = pneg %p57
        $region34: #{tpu_custom_call.1} parent=31 // pred_check_branch
          %292 = sbr.rel (%p290) target = $region36
        $region35: #{tpu_custom_call.1} parent=31 // pred_region
          %s293 = smul.u32 %s28, 2
          %s294 = sadd.s32 %s293, %s29
          %p295 = scmp.lt.s32.totalorder %s294, 3
          %s296 = scalar_select %p295, %s294, 3
          %s297 = smul.addr %s296, 4
          %s298 = scalar_lea.vmem %s0, %s297
          %s299 = smul.u32 %s28, 2
          %s300 = sadd.s32 %s299, %s29
        $region36: #{tpu_custom_call.1} parent=31 // pred_fallthru
          _
      $region32: #{tpu_custom_call.1} parent=5 // pred_fallthru
        _
      %p301 = scmp.le.s32.totalorder 1, %s21
      %p302 = scmp.lt.s32.totalorder %s21, 5
      %p303 = pnand %p301, %p302
      %p304 = pneg %p303
      // Predicated region
      $region37: #{tpu_custom_call.1} parent=5 // pred_check
        _
      $region38: #{tpu_custom_call.1} parent=5 // pred_check_branch
        %306 = sbr.rel (%p303) target = $region40
      $region39: #{tpu_custom_call.1} parent=5 // pred_region
        %s307 = ssub.s32 %s21, 1
        %s308 = smul.u32 %s30, 2
        %s309 = sadd.s32 %s308, %s31
        %p310 = scmp.lt.s32.totalorder %s309, 3
        %s311 = scalar_select %p310, %s309, 3
        %s312 = smul.addr %s311, 4
        %s313 = scalar_lea.vmem %s0, %s312
        %p314 = pneg %p63
        %p315 = pneg %p60
        %p316 = pneg %p84
        %p317 = pneg %p81
        %p318 = pneg %p105
        %p319 = pneg %p102
        %p320 = pneg %p126
        %p321 = pneg %p123
        %p322 = pneg %p147
        %p323 = pneg %p144
        %p324 = pneg %p177
        %p325 = pneg %p174
        %s326 = sand.u32 %s164, 1
        %s327 = scalar_lea.sflag [#allocation3], %s326
        %s328 = sand.u32 %s164, 1
        %s329 = smul.addr %s328, 4
        %s330 = scalar_lea.vmem [#allocation2], %s329
        %p331 = pneg %p207
        %p332 = pneg %p204
        %s333 = sand.u32 %s194, 1
        %s334 = scalar_lea.sflag [#allocation5], %s333
        %s335 = sand.u32 %s194, 1
        %s336 = scalar_lea.vmem [#allocation4], %s335
        %p337 = pneg %p233
        %p338 = pneg %p230
        %p339 = scmp.lt.s32.totalorder %s30, 1
        %s340 = scalar_select %p339, %s30, 1
        %s341 = smul.addr %s340, 16
        %s342 = smul.addr %s341, 8
        %s343 = scalar_lea.vmem %s7, %s342
        %p344 = pneg %p259
        %p345 = pneg %p256
        %p346 = scmp.lt.s32.totalorder %s30, 1
        %s347 = scalar_select %p346, %s30, 1
        %s348 = scalar_lea.vmem %s8, %s347
        %s349 = smul.u32 %s30, 2
        %s350 = sadd.s32 %s349, %s31
        %p351 = scmp.lt.s32.totalorder %s350, 3
        %s352 = scalar_select %p351, %s350, 3
        %s353 = smul.addr %s352, 4
        %s354 = scalar_lea.vmem %s0, %s353
        %s355 = smul.u32 %s30, 2
        %s356 = sadd.s32 %s355, %s31
        %s357 = smul.u32 %s30, 2
        %s358 = sadd.s32 %s357, %s31
        %s359 = smul.u32 %s30, 2
        %s360 = sadd.s32 %s359, %s31
        %p361 = scmp.lt.s32.totalorder %s30, 1
        %s362 = scalar_select %p361, %s30, 1
        %s363 = smul.addr %s362, 16
        %s364 = smul.addr %s363, 8
        %s365 = scalar_lea.vmem %s7, %s364
        %p366 = scmp.lt.s32.totalorder %s30, 1
        %s367 = scalar_select %p366, %s30, 1
        %s368 = scalar_lea.vmem %s8, %s367
        %p369 = scmp.eq.s32.totalorder %s31, 0
        // Predicated region
        $region41: #{tpu_custom_call.1} parent=39 // pred_check
          %p370 = pneg %p369
        $region42: #{tpu_custom_call.1} parent=39 // pred_check_branch
          %372 = sbr.rel (%p370) target = $region44
        $region43: #{tpu_custom_call.1} parent=39 // pred_region
          %vm373 = vcmask 7168
          %374 = vst.msk [vmem:[%s365] sm:$0xff] %vm373, 0.0
          %375 = vst.msk [vmem:[%s365 + $0x8] sm:$0xff] %vm373, 0.0
          %376 = vst.msk [vmem:[%s365 + $0x10] sm:$0xff] %vm373, 0.0
          %377 = vst.msk [vmem:[%s365 + $0x18] sm:$0xff] %vm373, 0.0
          %378 = vst.msk [vmem:[%s365 + $0x20] sm:$0xff] %vm373, 0.0
          %379 = vst.msk [vmem:[%s365 + $0x28] sm:$0xff] %vm373, 0.0
          %380 = vst.msk [vmem:[%s365 + $0x30] sm:$0xff] %vm373, 0.0
          %381 = vst.msk [vmem:[%s365 + $0x38] sm:$0xff] %vm373, 0.0
          %382 = vst.msk [vmem:[%s365 + $0x40] sm:$0xff] %vm373, 0.0
          %383 = vst.msk [vmem:[%s365 + $0x48] sm:$0xff] %vm373, 0.0
          %384 = vst.msk [vmem:[%s365 + $0x50] sm:$0xff] %vm373, 0.0
          %385 = vst.msk [vmem:[%s365 + $0x58] sm:$0xff] %vm373, 0.0
          %386 = vst.msk [vmem:[%s365 + $0x60] sm:$0xff] %vm373, 0.0
          %387 = vst.msk [vmem:[%s365 + $0x68] sm:$0xff] %vm373, 0.0
          %388 = vst.msk [vmem:[%s365 + $0x70] sm:$0xff] %vm373, 0.0
          %389 = vst.msk [vmem:[%s365 + $0x78] sm:$0xff] %vm373, 0.0
          %vm390 = vcmask 0
          %391 = vst.msk [vmem:[%s368] sm:$0x1] %vm390, 0.0
        $region44: #{tpu_custom_call.1} parent=39 // pred_fallthru
          _
        %v392 = vld [vmem:[%s354] sm:$0xf]
        %v393 = vld [vmem:[%s1] sm:$0xff]
        %v394 = vld [vmem:[%s1 + $0x8] sm:$0xff]
        %v395 = vld [vmem:[%s1 + $0x10] sm:$0xff]
        %v396 = vld [vmem:[%s1 + $0x18] sm:$0xff]
        %v397 = vld [vmem:[%s1 + $0x20] sm:$0xff]
        %v398 = vld [vmem:[%s1 + $0x28] sm:$0xff]
        %v399 = vld [vmem:[%s1 + $0x30] sm:$0xff]
        %v400 = vld [vmem:[%s1 + $0x38] sm:$0xff]
        %v401 = vld [vmem:[%s1 + $0x40] sm:$0xff]
        %v402 = vld [vmem:[%s1 + $0x48] sm:$0xff]
        %v403 = vld [vmem:[%s1 + $0x50] sm:$0xff]
        %v404 = vld [vmem:[%s1 + $0x58] sm:$0xff]
        %v405 = vld [vmem:[%s1 + $0x60] sm:$0xff]
        %v406 = vld [vmem:[%s1 + $0x68] sm:$0xff]
        %v407 = vld [vmem:[%s1 + $0x70] sm:$0xff]
        %v408 = vld [vmem:[%s1 + $0x78] sm:$0xff]
        %v409 = vld [vmem:[%s2] sm:$0xff]
        %v410 = vld [vmem:[%s2 + $0x8] sm:$0xff]
        %v411 = vld [vmem:[%s2 + $0x10] sm:$0xff]
        %v412 = vld [vmem:[%s2 + $0x18] sm:$0xff]
        %v413 = vld [vmem:[%s2 + $0x20] sm:$0xff]
        %v414 = vld [vmem:[%s2 + $0x28] sm:$0xff]
        %v415 = vld [vmem:[%s2 + $0x30] sm:$0xff]
        %v416 = vld [vmem:[%s2 + $0x38] sm:$0xff]
        %v417 = vld [vmem:[%s2 + $0x40] sm:$0xff]
        %v418 = vld [vmem:[%s2 + $0x48] sm:$0xff]
        %v419 = vld [vmem:[%s2 + $0x50] sm:$0xff]
        %v420 = vld [vmem:[%s2 + $0x58] sm:$0xff]
        %v421 = vld [vmem:[%s2 + $0x60] sm:$0xff]
        %v422 = vld [vmem:[%s2 + $0x68] sm:$0xff]
        %v423 = vld [vmem:[%s2 + $0x70] sm:$0xff]
        %v424 = vld [vmem:[%s2 + $0x78] sm:$0xff]
        %426 = vset.pattern.permute.xlu0 0
        %427 = vperm.xlu0 %426, %v393
        %v428 = vpop.permute.xlu0 %427
        %431 = vset.pattern.permute.xlu0 0
        %432 = vperm.xlu0 %431, %v394
        %v433 = vpop.permute.xlu0 %432
        %436 = vset.pattern.permute.xlu0 0
        %437 = vperm.xlu0 %436, %v395
        %v438 = vpop.permute.xlu0 %437
        %441 = vset.pattern.permute.xlu0 0
        %442 = vperm.xlu0 %441, %v396
        %v443 = vpop.permute.xlu0 %442
        %446 = vset.pattern.permute.xlu0 0
        %447 = vperm.xlu0 %446, %v397
        %v448 = vpop.permute.xlu0 %447
        %451 = vset.pattern.permute.xlu0 0
        %452 = vperm.xlu0 %451, %v398
        %v453 = vpop.permute.xlu0 %452
        %456 = vset.pattern.permute.xlu0 0
        %457 = vperm.xlu0 %456, %v399
        %v458 = vpop.permute.xlu0 %457
        %461 = vset.pattern.permute.xlu0 0
        %462 = vperm.xlu0 %461, %v400
        %v463 = vpop.permute.xlu0 %462
        %466 = vset.pattern.permute.xlu0 0
        %467 = vperm.xlu0 %466, %v401
        %v468 = vpop.permute.xlu0 %467
        %471 = vset.pattern.permute.xlu0 0
        %472 = vperm.xlu0 %471, %v402
        %v473 = vpop.permute.xlu0 %472
        %476 = vset.pattern.permute.xlu0 0
        %477 = vperm.xlu0 %476, %v403
        %v478 = vpop.permute.xlu0 %477
        %481 = vset.pattern.permute.xlu0 0
        %482 = vperm.xlu0 %481, %v404
        %v483 = vpop.permute.xlu0 %482
        %486 = vset.pattern.permute.xlu0 0
        %487 = vperm.xlu0 %486, %v405
        %v488 = vpop.permute.xlu0 %487
        %491 = vset.pattern.permute.xlu0 0
        %492 = vperm.xlu0 %491, %v406
        %v493 = vpop.permute.xlu0 %492
        %496 = vset.pattern.permute.xlu0 0
        %497 = vperm.xlu0 %496, %v407
        %v498 = vpop.permute.xlu0 %497
        %501 = vset.pattern.permute.xlu0 0
        %502 = vperm.xlu0 %501, %v408
        %v503 = vpop.permute.xlu0 %502
        %v505 = vperm.slane %v392, 0
        %v506 = vmul.f32 %v428, %v505
        %v507 = vmul.f32 %v433, %v505
        %v508 = vmul.f32 %v438, %v505
        %v509 = vmul.f32 %v443, %v505
        %v510 = vmul.f32 %v448, %v505
        %v511 = vmul.f32 %v453, %v505
        %v512 = vmul.f32 %v458, %v505
        %v513 = vmul.f32 %v463, %v505
        %v514 = vmul.f32 %v468, %v505
        %v515 = vmul.f32 %v473, %v505
        %v516 = vmul.f32 %v478, %v505
        %v517 = vmul.f32 %v483, %v505
        %v518 = vmul.f32 %v488, %v505
        %v519 = vmul.f32 %v493, %v505
        %v520 = vmul.f32 %v498, %v505
        %v521 = vmul.f32 %v503, %v505
        %523 = vset.pattern.permute.xlu0 0
        %524 = vperm.xlu0 %523, %v409
        %v525 = vpop.permute.xlu0 %524
        %528 = vset.pattern.permute.xlu0 0
        %529 = vperm.xlu0 %528, %v410
        %v530 = vpop.permute.xlu0 %529
        %533 = vset.pattern.permute.xlu0 0
        %534 = vperm.xlu0 %533, %v411
        %v535 = vpop.permute.xlu0 %534
        %538 = vset.pattern.permute.xlu0 0
        %539 = vperm.xlu0 %538, %v412
        %v540 = vpop.permute.xlu0 %539
        %543 = vset.pattern.permute.xlu0 0
        %544 = vperm.xlu0 %543, %v413
        %v545 = vpop.permute.xlu0 %544
        %548 = vset.pattern.permute.xlu0 0
        %549 = vperm.xlu0 %548, %v414
        %v550 = vpop.permute.xlu0 %549
        %553 = vset.pattern.permute.xlu0 0
        %554 = vperm.xlu0 %553, %v415
        %v555 = vpop.permute.xlu0 %554
        %558 = vset.pattern.permute.xlu0 0
        %559 = vperm.xlu0 %558, %v416
        %v560 = vpop.permute.xlu0 %559
        %563 = vset.pattern.permute.xlu0 0
        %564 = vperm.xlu0 %563, %v417
        %v565 = vpop.permute.xlu0 %564
        %568 = vset.pattern.permute.xlu0 0
        %569 = vperm.xlu0 %568, %v418
        %v570 = vpop.permute.xlu0 %569
        %573 = vset.pattern.permute.xlu0 0
        %574 = vperm.xlu0 %573, %v419
        %v575 = vpop.permute.xlu0 %574
        %578 = vset.pattern.permute.xlu0 0
        %579 = vperm.xlu0 %578, %v420
        %v580 = vpop.permute.xlu0 %579
        %583 = vset.pattern.permute.xlu0 0
        %584 = vperm.xlu0 %583, %v421
        %v585 = vpop.permute.xlu0 %584
        %588 = vset.pattern.permute.xlu0 0
        %589 = vperm.xlu0 %588, %v422
        %v590 = vpop.permute.xlu0 %589
        %593 = vset.pattern.permute.xlu0 0
        %594 = vperm.xlu0 %593, %v423
        %v595 = vpop.permute.xlu0 %594
        %598 = vset.pattern.permute.xlu0 0
        %599 = vperm.xlu0 %598, %v424
        %v600 = vpop.permute.xlu0 %599
        %v602 = vadd.f32 %v525, %v506
        %v603 = vadd.f32 %v530, %v507
        %v604 = vadd.f32 %v535, %v508
        %v605 = vadd.f32 %v540, %v509
        %v606 = vadd.f32 %v545, %v510
        %v607 = vadd.f32 %v550, %v511
        %v608 = vadd.f32 %v555, %v512
        %v609 = vadd.f32 %v560, %v513
        %v610 = vadd.f32 %v565, %v514
        %v611 = vadd.f32 %v570, %v515
        %v612 = vadd.f32 %v575, %v516
        %v613 = vadd.f32 %v580, %v517
        %v614 = vadd.f32 %v585, %v518
        %v615 = vadd.f32 %v590, %v519
        %v616 = vadd.f32 %v595, %v520
        %v617 = vadd.f32 %v600, %v521
        %618 = vset.pattern.permute.xlu0 1
        %619 = vperm.xlu0 %618, %v393
        %v620 = vpop.permute.xlu0 %619
        %622 = vset.pattern.permute.xlu0 1
        %623 = vperm.xlu0 %622, %v394
        %v624 = vpop.permute.xlu0 %623
        %626 = vset.pattern.permute.xlu0 1
        %627 = vperm.xlu0 %626, %v395
        %v628 = vpop.permute.xlu0 %627
        %630 = vset.pattern.permute.xlu0 1
        %631 = vperm.xlu0 %630, %v396
        %v632 = vpop.permute.xlu0 %631
        %634 = vset.pattern.permute.xlu0 1
        %635 = vperm.xlu0 %634, %v397
        %v636 = vpop.permute.xlu0 %635
        %638 = vset.pattern.permute.xlu0 1
        %639 = vperm.xlu0 %638, %v398
        %v640 = vpop.permute.xlu0 %639
        %642 = vset.pattern.permute.xlu0 1
        %643 = vperm.xlu0 %642, %v399
        %v644 = vpop.permute.xlu0 %643
        %646 = vset.pattern.permute.xlu0 1
        %647 = vperm.xlu0 %646, %v400
        %v648 = vpop.permute.xlu0 %647
        %650 = vset.pattern.permute.xlu0 1
        %651 = vperm.xlu0 %650, %v401
        %v652 = vpop.permute.xlu0 %651
        %654 = vset.pattern.permute.xlu0 1
        %655 = vperm.xlu0 %654, %v402
        %v656 = vpop.permute.xlu0 %655
        %658 = vset.pattern.permute.xlu0 1
        %659 = vperm.xlu0 %658, %v403
        %v660 = vpop.permute.xlu0 %659
        %662 = vset.pattern.permute.xlu0 1
        %663 = vperm.xlu0 %662, %v404
        %v664 = vpop.permute.xlu0 %663
        %666 = vset.pattern.permute.xlu0 1
        %667 = vperm.xlu0 %666, %v405
        %v668 = vpop.permute.xlu0 %667
        %670 = vset.pattern.permute.xlu0 1
        %671 = vperm.xlu0 %670, %v406
        %v672 = vpop.permute.xlu0 %671
        %674 = vset.pattern.permute.xlu0 1
        %675 = vperm.xlu0 %674, %v407
        %v676 = vpop.permute.xlu0 %675
        %678 = vset.pattern.permute.xlu0 1
        %679 = vperm.xlu0 %678, %v408
        %v680 = vpop.permute.xlu0 %679
        %v682 = vperm.slane %v392, 1
        %v683 = vmul.f32 %v620, %v682
        %v684 = vmul.f32 %v624, %v682
        %v685 = vmul.f32 %v628, %v682
        %v686 = vmul.f32 %v632, %v682
        %v687 = vmul.f32 %v636, %v682
        %v688 = vmul.f32 %v640, %v682
        %v689 = vmul.f32 %v644, %v682
        %v690 = vmul.f32 %v648, %v682
        %v691 = vmul.f32 %v652, %v682
        %v692 = vmul.f32 %v656, %v682
        %v693 = vmul.f32 %v660, %v682
        %v694 = vmul.f32 %v664, %v682
        %v695 = vmul.f32 %v668, %v682
        %v696 = vmul.f32 %v672, %v682
        %v697 = vmul.f32 %v676, %v682
        %v698 = vmul.f32 %v680, %v682
        %v699 = vadd.f32 %v602, %v683
        %v700 = vadd.f32 %v603, %v684
        %v701 = vadd.f32 %v604, %v685
        %v702 = vadd.f32 %v605, %v686
        %v703 = vadd.f32 %v606, %v687
        %v704 = vadd.f32 %v607, %v688
        %v705 = vadd.f32 %v608, %v689
        %v706 = vadd.f32 %v609, %v690
        %v707 = vadd.f32 %v610, %v691
        %v708 = vadd.f32 %v611, %v692
        %v709 = vadd.f32 %v612, %v693
        %v710 = vadd.f32 %v613, %v694
        %v711 = vadd.f32 %v614, %v695
        %v712 = vadd.f32 %v615, %v696
        %v713 = vadd.f32 %v616, %v697
        %v714 = vadd.f32 %v617, %v698
        %715 = vset.pattern.permute.xlu0 2
        %716 = vperm.xlu0 %715, %v393
        %v717 = vpop.permute.xlu0 %716
        %719 = vset.pattern.permute.xlu0 2
        %720 = vperm.xlu0 %719, %v394
        %v721 = vpop.permute.xlu0 %720
        %723 = vset.pattern.permute.xlu0 2
        %724 = vperm.xlu0 %723, %v395
        %v725 = vpop.permute.xlu0 %724
        %727 = vset.pattern.permute.xlu0 2
        %728 = vperm.xlu0 %727, %v396
        %v729 = vpop.permute.xlu0 %728
        %731 = vset.pattern.permute.xlu0 2
        %732 = vperm.xlu0 %731, %v397
        %v733 = vpop.permute.xlu0 %732
        %735 = vset.pattern.permute.xlu0 2
        %736 = vperm.xlu0 %735, %v398
        %v737 = vpop.permute.xlu0 %736
        %739 = vset.pattern.permute.xlu0 2
        %740 = vperm.xlu0 %739, %v399
        %v741 = vpop.permute.xlu0 %740
        %743 = vset.pattern.permute.xlu0 2
        %744 = vperm.xlu0 %743, %v400
        %v745 = vpop.permute.xlu0 %744
        %747 = vset.pattern.permute.xlu0 2
        %748 = vperm.xlu0 %747, %v401
        %v749 = vpop.permute.xlu0 %748
        %751 = vset.pattern.permute.xlu0 2
        %752 = vperm.xlu0 %751, %v402
        %v753 = vpop.permute.xlu0 %752
        %755 = vset.pattern.permute.xlu0 2
        %756 = vperm.xlu0 %755, %v403
        %v757 = vpop.permute.xlu0 %756
        %759 = vset.pattern.permute.xlu0 2
        %760 = vperm.xlu0 %759, %v404
        %v761 = vpop.permute.xlu0 %760
        %763 = vset.pattern.permute.xlu0 2
        %764 = vperm.xlu0 %763, %v405
        %v765 = vpop.permute.xlu0 %764
        %767 = vset.pattern.permute.xlu0 2
        %768 = vperm.xlu0 %767, %v406
        %v769 = vpop.permute.xlu0 %768
        %771 = vset.pattern.permute.xlu0 2
        %772 = vperm.xlu0 %771, %v407
        %v773 = vpop.permute.xlu0 %772
        %775 = vset.pattern.permute.xlu0 2
        %776 = vperm.xlu0 %775, %v408
        %v777 = vpop.permute.xlu0 %776
        %v779 = vperm.slane %v392, 2
        %v780 = vmul.f32 %v717, %v779
        %v781 = vmul.f32 %v721, %v779
        %v782 = vmul.f32 %v725, %v779
        %v783 = vmul.f32 %v729, %v779
        %v784 = vmul.f32 %v733, %v779
        %v785 = vmul.f32 %v737, %v779
        %v786 = vmul.f32 %v741, %v779
        %v787 = vmul.f32 %v745, %v779
        %v788 = vmul.f32 %v749, %v779
        %v789 = vmul.f32 %v753, %v779
        %v790 = vmul.f32 %v757, %v779
        %v791 = vmul.f32 %v761, %v779
        %v792 = vmul.f32 %v765, %v779
        %v793 = vmul.f32 %v769, %v779
        %v794 = vmul.f32 %v773, %v779
        %v795 = vmul.f32 %v777, %v779
        %v796 = vadd.f32 %v699, %v780
        %v797 = vadd.f32 %v700, %v781
        %v798 = vadd.f32 %v701, %v782
        %v799 = vadd.f32 %v702, %v783
        %v800 = vadd.f32 %v703, %v784
        %v801 = vadd.f32 %v704, %v785
        %v802 = vadd.f32 %v705, %v786
        %v803 = vadd.f32 %v706, %v787
        %v804 = vadd.f32 %v707, %v788
        %v805 = vadd.f32 %v708, %v789
        %v806 = vadd.f32 %v709, %v790
        %v807 = vadd.f32 %v710, %v791
        %v808 = vadd.f32 %v711, %v792
        %v809 = vadd.f32 %v712, %v793
        %v810 = vadd.f32 %v713, %v794
        %v811 = vadd.f32 %v714, %v795
        %812 = vset.pattern.permute.xlu0 3
        %813 = vperm.xlu0 %812, %v393
        %v814 = vpop.permute.xlu0 %813
        %816 = vset.pattern.permute.xlu0 3
        %817 = vperm.xlu0 %816, %v394
        %v818 = vpop.permute.xlu0 %817
        %820 = vset.pattern.permute.xlu0 3
        %821 = vperm.xlu0 %820, %v395
        %v822 = vpop.permute.xlu0 %821
        %824 = vset.pattern.permute.xlu0 3
        %825 = vperm.xlu0 %824, %v396
        %v826 = vpop.permute.xlu0 %825
        %828 = vset.pattern.permute.xlu0 3
        %829 = vperm.xlu0 %828, %v397
        %v830 = vpop.permute.xlu0 %829
        %832 = vset.pattern.permute.xlu0 3
        %833 = vperm.xlu0 %832, %v398
        %v834 = vpop.permute.xlu0 %833
        %836 = vset.pattern.permute.xlu0 3
        %837 = vperm.xlu0 %836, %v399
        %v838 = vpop.permute.xlu0 %837
        %840 = vset.pattern.permute.xlu0 3
        %841 = vperm.xlu0 %840, %v400
        %v842 = vpop.permute.xlu0 %841
        %844 = vset.pattern.permute.xlu0 3
        %845 = vperm.xlu0 %844, %v401
        %v846 = vpop.permute.xlu0 %845
        %848 = vset.pattern.permute.xlu0 3
        %849 = vperm.xlu0 %848, %v402
        %v850 = vpop.permute.xlu0 %849
        %852 = vset.pattern.permute.xlu0 3
        %853 = vperm.xlu0 %852, %v403
        %v854 = vpop.permute.xlu0 %853
        %856 = vset.pattern.permute.xlu0 3
        %857 = vperm.xlu0 %856, %v404
        %v858 = vpop.permute.xlu0 %857
        %860 = vset.pattern.permute.xlu0 3
        %861 = vperm.xlu0 %860, %v405
        %v862 = vpop.permute.xlu0 %861
        %864 = vset.pattern.permute.xlu0 3
        %865 = vperm.xlu0 %864, %v406
        %v866 = vpop.permute.xlu0 %865
        %868 = vset.pattern.permute.xlu0 3
        %869 = vperm.xlu0 %868, %v407
        %v870 = vpop.permute.xlu0 %869
        %872 = vset.pattern.permute.xlu0 3
        %873 = vperm.xlu0 %872, %v408
        %v874 = vpop.permute.xlu0 %873
        %v876 = vperm.slane %v392, 3
        %v877 = vmul.f32 %v814, %v876
        %v878 = vmul.f32 %v818, %v876
        %v879 = vmul.f32 %v822, %v876
        %v880 = vmul.f32 %v826, %v876
        %v881 = vmul.f32 %v830, %v876
        %v882 = vmul.f32 %v834, %v876
        %v883 = vmul.f32 %v838, %v876
        %v884 = vmul.f32 %v842, %v876
        %v885 = vmul.f32 %v846, %v876
        %v886 = vmul.f32 %v850, %v876
        %v887 = vmul.f32 %v854, %v876
        %v888 = vmul.f32 %v858, %v876
        %v889 = vmul.f32 %v862, %v876
        %v890 = vmul.f32 %v866, %v876
        %v891 = vmul.f32 %v870, %v876
        %v892 = vmul.f32 %v874, %v876
        %v893 = vadd.f32 %v796, %v877
        %v894 = vadd.f32 %v797, %v878
        %v895 = vadd.f32 %v798, %v879
        %v896 = vadd.f32 %v799, %v880
        %v897 = vadd.f32 %v800, %v881
        %v898 = vadd.f32 %v801, %v882
        %v899 = vadd.f32 %v802, %v883
        %v900 = vadd.f32 %v803, %v884
        %v901 = vadd.f32 %v804, %v885
        %v902 = vadd.f32 %v805, %v886
        %v903 = vadd.f32 %v806, %v887
        %v904 = vadd.f32 %v807, %v888
        %v905 = vadd.f32 %v808, %v889
        %v906 = vadd.f32 %v809, %v890
        %v907 = vadd.f32 %v810, %v891
        %v908 = vadd.f32 %v811, %v892
        %v909 = vmin.f32 %v893, %v897
        %v910 = vmin.f32 %v894, %v898
        %v911 = vmin.f32 %v895, %v899
        %v912 = vmin.f32 %v896, %v900
        %v913 = vmin.f32 %v909, %v901
        %v914 = vmin.f32 %v910, %v902
        %v915 = vmin.f32 %v911, %v903
        %v916 = vmin.f32 %v912, %v904
        %v917 = vmin.f32 %v913, %v905
        %v918 = vmin.f32 %v914, %v906
        %v919 = vmin.f32 %v915, %v907
        %v920 = vmin.f32 %v916, %v908
        %v921 = vmin.f32 %v917, %v918
        %v922 = vmin.f32 %v919, %v920
        %v923 = vmin.f32 %v921, %v922
        %v924 = vrot.slane %v923, 4
        %v925 = vmin.f32 %v923, %v924
        %v926 = vrot.slane %v925, 2
        %v927 = vmin.f32 %v925, %v926
        %v928 = vrot.slane %v927, 1
        %v929 = vmin.f32 %v927, %v928
        %v930 = vlaneseq
        %v931 = vshrl.u32 %v930, 7
        %v932 = vadd.s32 %v931, 8
        %v933 = vadd.s32 %v931, 16
        %v934 = vadd.s32 %v931, 24
        %v935 = vadd.s32 %v931, 32
        %v936 = vadd.s32 %v931, 40
        %v937 = vadd.s32 %v931, 48
        %v938 = vadd.s32 %v931, 56
        %v939 = vadd.s32 %v931, 64
        %v940 = vadd.s32 %v931, 72
        %v941 = vadd.s32 %v931, 80
        %v942 = vadd.s32 %v931, 88
        %v943 = vadd.s32 %v931, 96
        %v944 = vadd.s32 %v931, 104
        %v945 = vadd.s32 %v931, 112
        %v946 = vadd.s32 %v931, 120
        %v947 = vcvt.s32.f32 %v931
        %v948 = vcvt.s32.f32 %v932
        %v949 = vcvt.s32.f32 %v933
        %v950 = vcvt.s32.f32 %v934
        %v951 = vcvt.s32.f32 %v935
        %v952 = vcvt.s32.f32 %v936
        %v953 = vcvt.s32.f32 %v937
        %v954 = vcvt.s32.f32 %v938
        %v955 = vcvt.s32.f32 %v939
        %v956 = vcvt.s32.f32 %v940
        %v957 = vcvt.s32.f32 %v941
        %v958 = vcvt.s32.f32 %v942
        %v959 = vcvt.s32.f32 %v943
        %v960 = vcvt.s32.f32 %v944
        %v961 = vcvt.s32.f32 %v945
        %v962 = vcvt.s32.f32 %v946
        %vm963 = vcmp.le.f32.partialorder %v893, %v929
        %vm964 = vcmp.le.f32.partialorder %v894, %v929
        %vm965 = vcmp.le.f32.partialorder %v895, %v929
        %vm966 = vcmp.le.f32.partialorder %v896, %v929
        %vm967 = vcmp.le.f32.partialorder %v897, %v929
        %vm968 = vcmp.le.f32.partialorder %v898, %v929
        %vm969 = vcmp.le.f32.partialorder %v899, %v929
        %vm970 = vcmp.le.f32.partialorder %v900, %v929
        %vm971 = vcmp.le.f32.partialorder %v901, %v929
        %vm972 = vcmp.le.f32.partialorder %v902, %v929
        %vm973 = vcmp.le.f32.partialorder %v903, %v929
        %vm974 = vcmp.le.f32.partialorder %v904, %v929
        %vm975 = vcmp.le.f32.partialorder %v905, %v929
        %vm976 = vcmp.le.f32.partialorder %v906, %v929
        %vm977 = vcmp.le.f32.partialorder %v907, %v929
        %vm978 = vcmp.le.f32.partialorder %v908, %v929
        %v979 = vsel %vm963, %v947, 128.0
        %v980 = vsel %vm964, %v948, 128.0
        %v981 = vsel %vm965, %v949, 128.0
        %v982 = vsel %vm966, %v950, 128.0
        %v983 = vsel %vm967, %v951, 128.0
        %v984 = vsel %vm968, %v952, 128.0
        %v985 = vsel %vm969, %v953, 128.0
        %v986 = vsel %vm970, %v954, 128.0
        %v987 = vsel %vm971, %v955, 128.0
        %v988 = vsel %vm972, %v956, 128.0
        %v989 = vsel %vm973, %v957, 128.0
        %v990 = vsel %vm974, %v958, 128.0
        %v991 = vsel %vm975, %v959, 128.0
        %v992 = vsel %vm976, %v960, 128.0
        %v993 = vsel %vm977, %v961, 128.0
        %v994 = vsel %vm978, %v962, 128.0
        %v995 = vmin.f32 %v979, %v983
        %v996 = vmin.f32 %v980, %v984
        %v997 = vmin.f32 %v981, %v985
        %v998 = vmin.f32 %v982, %v986
        %v999 = vmin.f32 %v995, %v987
        %v1000 = vmin.f32 %v996, %v988
        %v1001 = vmin.f32 %v997, %v989
        %v1002 = vmin.f32 %v998, %v990
        %v1003 = vmin.f32 %v999, %v991
        %v1004 = vmin.f32 %v1000, %v992
        %v1005 = vmin.f32 %v1001, %v993
        %v1006 = vmin.f32 %v1002, %v994
        %v1007 = vmin.f32 %v1003, %v1004
        %v1008 = vmin.f32 %v1005, %v1006
        %v1009 = vmin.f32 %v1007, %v1008
        %v1010 = vrot.slane %v1009, 4
        %v1011 = vmin.f32 %v1009, %v1010
        %v1012 = vrot.slane %v1011, 2
        %v1013 = vmin.f32 %v1011, %v1012
        %v1014 = vrot.slane %v1013, 1
        %v1015 = vmin.f32 %v1013, %v1014
        %vm1016 = vcmp.eq.f32.partialorder %v947, %v1015
        %vm1017 = vcmp.eq.f32.partialorder %v948, %v1015
        %vm1018 = vcmp.eq.f32.partialorder %v949, %v1015
        %vm1019 = vcmp.eq.f32.partialorder %v950, %v1015
        %vm1020 = vcmp.eq.f32.partialorder %v951, %v1015
        %vm1021 = vcmp.eq.f32.partialorder %v952, %v1015
        %vm1022 = vcmp.eq.f32.partialorder %v953, %v1015
        %vm1023 = vcmp.eq.f32.partialorder %v954, %v1015
        %vm1024 = vcmp.eq.f32.partialorder %v955, %v1015
        %vm1025 = vcmp.eq.f32.partialorder %v956, %v1015
        %vm1026 = vcmp.eq.f32.partialorder %v957, %v1015
        %vm1027 = vcmp.eq.f32.partialorder %v958, %v1015
        %vm1028 = vcmp.eq.f32.partialorder %v959, %v1015
        %vm1029 = vcmp.eq.f32.partialorder %v960, %v1015
        %vm1030 = vcmp.eq.f32.partialorder %v961, %v1015
        %vm1031 = vcmp.eq.f32.partialorder %v962, %v1015
        %v1032 = vsel %vm1016, 1, 0
        %v1033 = vsel %vm1017, 1, 0
        %v1034 = vsel %vm1018, 1, 0
        %v1035 = vsel %vm1019, 1, 0
        %v1036 = vsel %vm1020, 1, 0
        %v1037 = vsel %vm1021, 1, 0
        %v1038 = vsel %vm1022, 1, 0
        %v1039 = vsel %vm1023, 1, 0
        %v1040 = vsel %vm1024, 1, 0
        %v1041 = vsel %vm1025, 1, 0
        %v1042 = vsel %vm1026, 1, 0
        %v1043 = vsel %vm1027, 1, 0
        %v1044 = vsel %vm1028, 1, 0
        %v1045 = vsel %vm1029, 1, 0
        %v1046 = vsel %vm1030, 1, 0
        %v1047 = vsel %vm1031, 1, 0
        %v1048 = vcvt.s32.f32 %v1032
        %v1049 = vcvt.s32.f32 %v1033
        %v1050 = vcvt.s32.f32 %v1034
        %v1051 = vcvt.s32.f32 %v1035
        %v1052 = vcvt.s32.f32 %v1036
        %v1053 = vcvt.s32.f32 %v1037
        %v1054 = vcvt.s32.f32 %v1038
        %v1055 = vcvt.s32.f32 %v1039
        %v1056 = vcvt.s32.f32 %v1040
        %v1057 = vcvt.s32.f32 %v1041
        %v1058 = vcvt.s32.f32 %v1042
        %v1059 = vcvt.s32.f32 %v1043
        %v1060 = vcvt.s32.f32 %v1044
        %v1061 = vcvt.s32.f32 %v1045
        %v1062 = vcvt.s32.f32 %v1046
        %v1063 = vcvt.s32.f32 %v1047
        %v1064 = vld [vmem:[%s3] sm:$0xf]
        %v1065 = vld [vmem:[%s4] sm:$0xf]
        %1067 = vset.pattern.permute.xlu0 0
        %1068 = vperm.xlu0 %1067, %v1065
        %v1069 = vpop.permute.xlu0 %1068
        %1071 = vmatpush.msra.mxu0 %v1063
        %1072 = vmatpush.msra.mxu0 %v1062
        %1073 = vmatpush.msra.mxu0 %v1061
        %1074 = vmatpush.msra.mxu0 %v1060
        %1075 = vmatpush.msra.mxu0 %v1059
        %1076 = vmatpush.msra.mxu0 %v1058
        %1077 = vmatpush.msra.mxu0 %v1057
        %1078 = vmatpush.msra.mxu0 %v1056
        %1079 = vmatpush.msra.mxu0 %v1055
        %1080 = vmatpush.msra.mxu0 %v1054
        %1081 = vmatpush.msra.mxu0 %v1053
        %1082 = vmatpush.msra.mxu0 %v1052
        %1083 = vmatpush.msra.mxu0 %v1051
        %1084 = vmatpush.msra.mxu0 %v1050
        %1085 = vmatpush.msra.mxu0 %v1049
        %1086 = vmatpush.msra.mxu0 %v1048
        %1087 = vmatmul.f32.gmra.mxu0 %v1064
        %v1088 = vpop.f32.mrf.mxu0
        %v1089 = vadd.f32 %v1069, %v1088
        %1090 = vdwg.mxu0
        %1091 = vst [vmem:[%s330] sm:$0xf] %v1089
        %v1092 = vcvt.f32.s32.to.zero.pseudo %v1015
        %1093 = vst [vmem:[%s336] sm:$0x1] %v1092
        %1094 = vmatpush.msra.mxu0 1.0
        %1095 = vmatpush.msra.mxu0 1.0
        %1096 = vmatpush.msra.mxu0 1.0
        %1097 = vmatpush.msra.mxu0 1.0
        %1098 = vmatpush.msra.mxu0 1.0
        %1099 = vmatpush.msra.mxu0 1.0
        %1100 = vmatpush.msra.mxu0 1.0
        %1101 = vmatpush.msra.mxu0 1.0
        %1102 = vmatpush.msra.mxu0 1.0
        %1103 = vmatpush.msra.mxu0 1.0
        %1104 = vmatpush.msra.mxu0 1.0
        %1105 = vmatpush.msra.mxu0 1.0
        %1106 = vmatpush.msra.mxu0 1.0
        %1107 = vmatpush.msra.mxu0 1.0
        %1108 = vmatpush.msra.mxu0 1.0
        %1109 = vmatpush.msra.mxu0 1.0
        %1110 = vmatmul.f32.gmra.mxu0 %v1048
        %v1111 = vpop.f32.mrf.mxu0
        %v1112 = vadd.f32 0.0, %v1111
        %1113 = vmatmul.f32.gmra.mxu0 %v1049
        %v1114 = vpop.f32.mrf.mxu0
        %v1115 = vadd.f32 0.0, %v1114
        %1116 = vmatmul.f32.gmra.mxu0 %v1050
        %v1117 = vpop.f32.mrf.mxu0
        %v1118 = vadd.f32 0.0, %v1117
        %1119 = vmatmul.f32.gmra.mxu0 %v1051
        %v1120 = vpop.f32.mrf.mxu0
        %v1121 = vadd.f32 0.0, %v1120
        %1122 = vmatmul.f32.gmra.mxu0 %v1052
        %v1123 = vpop.f32.mrf.mxu0
        %v1124 = vadd.f32 0.0, %v1123
        %1125 = vmatmul.f32.gmra.mxu0 %v1053
        %v1126 = vpop.f32.mrf.mxu0
        %v1127 = vadd.f32 0.0, %v1126
        %1128 = vmatmul.f32.gmra.mxu0 %v1054
        %v1129 = vpop.f32.mrf.mxu0
        %v1130 = vadd.f32 0.0, %v1129
        %1131 = vmatmul.f32.gmra.mxu0 %v1055
        %v1132 = vpop.f32.mrf.mxu0
        %v1133 = vadd.f32 0.0, %v1132
        %1134 = vmatmul.f32.gmra.mxu0 %v1056
        %v1135 = vpop.f32.mrf.mxu0
        %v1136 = vadd.f32 0.0, %v1135
        %1137 = vmatmul.f32.gmra.mxu0 %v1057
        %v1138 = vpop.f32.mrf.mxu0
        %v1139 = vadd.f32 0.0, %v1138
        %1140 = vmatmul.f32.gmra.mxu0 %v1058
        %v1141 = vpop.f32.mrf.mxu0
        %v1142 = vadd.f32 0.0, %v1141
        %1143 = vmatmul.f32.gmra.mxu0 %v1059
        %v1144 = vpop.f32.mrf.mxu0
        %v1145 = vadd.f32 0.0, %v1144
        %1146 = vmatmul.f32.gmra.mxu0 %v1060
        %v1147 = vpop.f32.mrf.mxu0
        %v1148 = vadd.f32 0.0, %v1147
        %1149 = vmatmul.f32.gmra.mxu0 %v1061
        %v1150 = vpop.f32.mrf.mxu0
        %v1151 = vadd.f32 0.0, %v1150
        %1152 = vmatmul.f32.gmra.mxu0 %v1062
        %v1153 = vpop.f32.mrf.mxu0
        %v1154 = vadd.f32 0.0, %v1153
        %1155 = vmatmul.f32.gmra.mxu0 %v1063
        %v1156 = vpop.f32.mrf.mxu0
        %v1157 = vadd.f32 0.0, %v1156
        %1158 = vdwg.mxu0
        %v1159 = vld [vmem:[%s365] sm:$0xff]
        %v1160 = vld [vmem:[%s365 + $0x8] sm:$0xff]
        %v1161 = vld [vmem:[%s365 + $0x10] sm:$0xff]
        %v1162 = vld [vmem:[%s365 + $0x18] sm:$0xff]
        %v1163 = vld [vmem:[%s365 + $0x20] sm:$0xff]
        %v1164 = vld [vmem:[%s365 + $0x28] sm:$0xff]
        %v1165 = vld [vmem:[%s365 + $0x30] sm:$0xff]
        %v1166 = vld [vmem:[%s365 + $0x38] sm:$0xff]
        %v1167 = vld [vmem:[%s365 + $0x40] sm:$0xff]
        %v1168 = vld [vmem:[%s365 + $0x48] sm:$0xff]
        %v1169 = vld [vmem:[%s365 + $0x50] sm:$0xff]
        %v1170 = vld [vmem:[%s365 + $0x58] sm:$0xff]
        %v1171 = vld [vmem:[%s365 + $0x60] sm:$0xff]
        %v1172 = vld [vmem:[%s365 + $0x68] sm:$0xff]
        %v1173 = vld [vmem:[%s365 + $0x70] sm:$0xff]
        %v1174 = vld [vmem:[%s365 + $0x78] sm:$0xff]
        %v1175 = vadd.f32 %v1159, %v1112
        %v1176 = vadd.f32 %v1160, %v1115
        %v1177 = vadd.f32 %v1161, %v1118
        %v1178 = vadd.f32 %v1162, %v1121
        %v1179 = vadd.f32 %v1163, %v1124
        %v1180 = vadd.f32 %v1164, %v1127
        %v1181 = vadd.f32 %v1165, %v1130
        %v1182 = vadd.f32 %v1166, %v1133
        %v1183 = vadd.f32 %v1167, %v1136
        %v1184 = vadd.f32 %v1168, %v1139
        %v1185 = vadd.f32 %v1169, %v1142
        %v1186 = vadd.f32 %v1170, %v1145
        %v1187 = vadd.f32 %v1171, %v1148
        %v1188 = vadd.f32 %v1172, %v1151
        %v1189 = vadd.f32 %v1173, %v1154
        %v1190 = vadd.f32 %v1174, %v1157
        %vm1191 = vcmask 7168
        %1192 = vst.msk [vmem:[%s365] sm:$0xff] %vm1191, %v1175
        %1193 = vst.msk [vmem:[%s365 + $0x8] sm:$0xff] %vm1191, %v1176
        %1194 = vst.msk [vmem:[%s365 + $0x10] sm:$0xff] %vm1191, %v1177
        %1195 = vst.msk [vmem:[%s365 + $0x18] sm:$0xff] %vm1191, %v1178
        %1196 = vst.msk [vmem:[%s365 + $0x20] sm:$0xff] %vm1191, %v1179
        %1197 = vst.msk [vmem:[%s365 + $0x28] sm:$0xff] %vm1191, %v1180
        %1198 = vst.msk [vmem:[%s365 + $0x30] sm:$0xff] %vm1191, %v1181
        %1199 = vst.msk [vmem:[%s365 + $0x38] sm:$0xff] %vm1191, %v1182
        %1200 = vst.msk [vmem:[%s365 + $0x40] sm:$0xff] %vm1191, %v1183
        %1201 = vst.msk [vmem:[%s365 + $0x48] sm:$0xff] %vm1191, %v1184
        %1202 = vst.msk [vmem:[%s365 + $0x50] sm:$0xff] %vm1191, %v1185
        %1203 = vst.msk [vmem:[%s365 + $0x58] sm:$0xff] %vm1191, %v1186
        %1204 = vst.msk [vmem:[%s365 + $0x60] sm:$0xff] %vm1191, %v1187
        %1205 = vst.msk [vmem:[%s365 + $0x68] sm:$0xff] %vm1191, %v1188
        %1206 = vst.msk [vmem:[%s365 + $0x70] sm:$0xff] %vm1191, %v1189
        %1207 = vst.msk [vmem:[%s365 + $0x78] sm:$0xff] %vm1191, %v1190
        %v1208 = vsub.f32 %v1089, %v392
        %v1209 = vld [vmem:[%s368] sm:$0x1]
        %v1210 = vmul.f32 %v1208, %v1208
        %vm1211 = vcmask 1043456
        %v1212 = vsel %vm1211, %v1210, 0.0
        %1213 = vadd.xlane.f32.xlu0 %v1212
        %v1214 = vpop.xlane.xlu0 %1213
        %v1215 = vrot.slane %v1214, 4
        %v1216 = vadd.f32 %v1214, %v1215
        %v1217 = vrot.slane %v1216, 2
        %v1218 = vadd.f32 %v1216, %v1217
        %v1219 = vrot.slane %v1218, 1
        %v1220 = vadd.f32 %v1218, %v1219
        %s1221 = vtos %v1220
        %v1222 = vstv %s1221
        %v1223 = vadd.f32 %v1209, %v1222
        %vm1224 = vcmask 0
        %1225 = vst.msk [vmem:[%s368] sm:$0x1] %vm1224, %v1223
        %s1226 = sand.u32 %s164, 1
        %s1227 = scalar_lea.sflag [#allocation3], %s1226
        %s1228 = sand.u32 %s164, 1
        %s1229 = smul.addr %s1228, 4
        %s1230 = scalar_lea.vmem [#allocation2], %s1229
        %s1231 = sand.u32 %s194, 1
        %s1232 = scalar_lea.sflag [#allocation5], %s1231
        %s1233 = sand.u32 %s194, 1
        %s1234 = scalar_lea.vmem [#allocation4], %s1233
        %p1235 = scmp.lt.s32.totalorder %s30, 1
        %s1236 = scalar_select %p1235, %s30, 1
        %s1237 = smul.addr %s1236, 16
        %s1238 = smul.addr %s1237, 8
        %s1239 = scalar_lea.vmem %s7, %s1238
        %p1240 = scmp.lt.s32.totalorder %s30, 1
        %s1241 = scalar_select %p1240, %s30, 1
        %s1242 = scalar_lea.vmem %s8, %s1241
        // Predicated region
        $region45: #{tpu_custom_call.1} parent=39 // pred_check
          %p1243 = pneg %p174
        $region46: #{tpu_custom_call.1} parent=39 // pred_check_branch
          %1245 = sbr.rel (%p1243) target = $region48
        $region47: #{tpu_custom_call.1} parent=39 // pred_region
          %s1246 = smul.u32 %s30, 2
          %s1247 = sadd.s32 %s1246, %s31
          %1249 = vsyncadd %s1227, 0
          %s1250 = smul.addr %s1247, 4
          %s1251 = scalar_lea.hbm %s5, %s1250
          %s1253 = sshll.u32 %s1230, 4
          %s1254 = int_to_ptr.vmem [resolvable:$true] %s1253
          %s1255 = sshll.u32 %s1251, 4
          %s1256 = int_to_ptr.hbm [resolvable:$true] %s1255
          %1258 = dma.vmem_to_hbm [thread:$0]  %s1254, 64, %s1256, %s1227
        $region48: #{tpu_custom_call.1} parent=39 // pred_fallthru
          _
        // Predicated region
        $region49: #{tpu_custom_call.1} parent=39 // pred_check
          %p1259 = pneg %p204
        $region50: #{tpu_custom_call.1} parent=39 // pred_check_branch
          %1261 = sbr.rel (%p1259) target = $region52
        $region51: #{tpu_custom_call.1} parent=39 // pred_region
          %s1262 = smul.u32 %s30, 2
          %s1263 = sadd.s32 %s1262, %s31
          %1265 = vsyncadd %s1232, 0
          %s1266 = scalar_lea.hbm %s6, %s1263
          %s1268 = sshll.u32 %s1234, 4
          %s1269 = int_to_ptr.vmem [resolvable:$true] %s1268
          %s1270 = sshll.u32 %s1266, 4
          %s1271 = int_to_ptr.hbm [resolvable:$true] %s1270
          %1273 = dma.vmem_to_hbm [thread:$0]  %s1269, 16, %s1271, %s1232
        $region52: #{tpu_custom_call.1} parent=39 // pred_fallthru
          _
        // Predicated region
        $region53: #{tpu_custom_call.1} parent=39 // pred_check
          %p1274 = pneg %p230
        $region54: #{tpu_custom_call.1} parent=39 // pred_check_branch
          %1276 = sbr.rel (%p1274) target = $region56
        $region55: #{tpu_custom_call.1} parent=39 // pred_region
          _
        $region56: #{tpu_custom_call.1} parent=39 // pred_fallthru
          _
        // Predicated region
        $region57: #{tpu_custom_call.1} parent=39 // pred_check
          %p1277 = pneg %p256
        $region58: #{tpu_custom_call.1} parent=39 // pred_check_branch
          %1279 = sbr.rel (%p1277) target = $region60
        $region59: #{tpu_custom_call.1} parent=39 // pred_region
          _
        $region60: #{tpu_custom_call.1} parent=39 // pred_fallthru
          _
      $region40: #{tpu_custom_call.1} parent=5 // pred_fallthru
        _
      %p1280 = scmp.le.s32.totalorder 2, %s21
      // Predicated region
      $region61: #{tpu_custom_call.1} parent=5 // pred_check
        %p1281 = pneg %p1280
      $region62: #{tpu_custom_call.1} parent=5 // pred_check_branch
        %1283 = sbr.rel (%p1281) target = $region64
      $region63: #{tpu_custom_call.1} parent=5 // pred_region
        %s1284 = ssub.s32 %s21, 2
        // Predicated region
        $region65: #{tpu_custom_call.1} parent=63 // pred_check
          %p1285 = pneg %p180
        $region66: #{tpu_custom_call.1} parent=63 // pred_check_branch
          %1287 = sbr.rel (%p1285) target = $region68
        $region67: #{tpu_custom_call.1} parent=63 // pred_region
          %s1288 = sand.u32 %s165, 1
          %s1289 = scalar_lea.sflag [#allocation3], %s1288
          %s1290 = sand.u32 %s165, 1
          %s1291 = smul.addr %s1290, 4
          %s1292 = scalar_lea.vmem [#allocation2], %s1291
          %1294 = dma.done %s1289, 64
        $region68: #{tpu_custom_call.1} parent=63 // pred_fallthru
          _
        // Predicated region
        $region69: #{tpu_custom_call.1} parent=63 // pred_check
          %p1295 = pneg %p210
        $region70: #{tpu_custom_call.1} parent=63 // pred_check_branch
          %1297 = sbr.rel (%p1295) target = $region72
        $region71: #{tpu_custom_call.1} parent=63 // pred_region
          %s1298 = sand.u32 %s195, 1
          %s1299 = scalar_lea.sflag [#allocation5], %s1298
          %s1300 = sand.u32 %s195, 1
          %s1301 = scalar_lea.vmem [#allocation4], %s1300
          %1303 = dma.done %s1299, 16
        $region72: #{tpu_custom_call.1} parent=63 // pred_fallthru
          _
        // Predicated region
        $region73: #{tpu_custom_call.1} parent=63 // pred_check
          %p1304 = pneg %p236
        $region74: #{tpu_custom_call.1} parent=63 // pred_check_branch
          %1306 = sbr.rel (%p1304) target = $region76
        $region75: #{tpu_custom_call.1} parent=63 // pred_region
          %p1307 = scmp.lt.s32.totalorder %s32, 1
          %s1308 = scalar_select %p1307, %s32, 1
          %s1309 = smul.addr %s1308, 16
          %s1310 = smul.addr %s1309, 8
          %s1311 = scalar_lea.vmem %s7, %s1310
        $region76: #{tpu_custom_call.1} parent=63 // pred_fallthru
          _
        // Predicated region
        $region77: #{tpu_custom_call.1} parent=63 // pred_check
          %p1312 = pneg %p262
        $region78: #{tpu_custom_call.1} parent=63 // pred_check_branch
          %1314 = sbr.rel (%p1312) target = $region80
        $region79: #{tpu_custom_call.1} parent=63 // pred_region
          %p1315 = scmp.lt.s32.totalorder %s32, 1
          %s1316 = scalar_select %p1315, %s32, 1
          %s1317 = scalar_lea.vmem %s8, %s1316
        $region80: #{tpu_custom_call.1} parent=63 // pred_fallthru
          _
      $region64: #{tpu_custom_call.1} parent=5 // pred_fallthru
        _
    $region6: #{tpu_custom_call.1} parent=1 // loop_footer
      %s25 = sadd.s32 1, %s21
    $region7: #{tpu_custom_call.1} parent=1 // loop_footer_branch
      %20 = sbr.rel target = $region3
    $region8: #{tpu_custom_call.1} parent=1 // loop_exit
      _
    %1318 = vsyncpa [#allocation3], 1
    %s1319 = scalar_lea.sflag [#allocation3], 1
    %1320 = vsyncpa %s1319, 1
    %1321 = vsyncpa [#allocation5], 1
    %s1322 = scalar_lea.sflag [#allocation5], 1
    %1323 = vsyncpa %s1322, 1

</llo_original>
